<compile_context>
chip_gen: v7x
topology: tpu7x:2x2x1
jax: 0.10.0
libtpu: 0.0.40
codegen_flags: <defaults>
</compile_context>

<pallas_src>
import functools

import jax
import jax.numpy as jnp
from jax.experimental import pallas as pl
from jax.experimental.pallas import tpu as pltpu


def _round_up(x, m):
    return (x + m - 1) // m * m


def _lstm_fc_kernel(x_ref, wih0_ref, whh0_ref, b0_ref, w1_ref, b1_ref,
                    fcw_ref, fcb_ref, out_ref, *, T, H, Bp):
    """One invocation runs the whole 2-layer LSTM recurrence + fused FC."""
    # Hoisted bias broadcasts (JAX does not CSE broadcast_in_dim inside the loop).
    b0 = jnp.broadcast_to(b0_ref[...], (Bp, 4 * H))
    b1 = jnp.broadcast_to(b1_ref[...], (Bp, 4 * H))

    # Layer-0 input-path matmul for ALL time steps in one MXU op: (T*Bp, I) @ (I, 4H).
    xg0 = jnp.dot(x_ref[...], wih0_ref[...], preferred_element_type=jnp.float32)

    def gates_to_hc(gates, c):
        # PyTorch gate order: i, f, g, o.
        i_g = jax.nn.sigmoid(gates[:, 0 * H:1 * H])
        f_g = jax.nn.sigmoid(gates[:, 1 * H:2 * H])
        g_g = jnp.tanh(gates[:, 2 * H:3 * H])
        o_g = jax.nn.sigmoid(gates[:, 3 * H:4 * H])
        c_new = f_g * c + i_g * g_g
        h_new = o_g * jnp.tanh(c_new)
        return h_new, c_new

    h0 = jnp.zeros((Bp, H), jnp.float32)
    c0 = jnp.zeros((Bp, H), jnp.float32)
    h1 = jnp.zeros((Bp, H), jnp.float32)
    c1 = jnp.zeros((Bp, H), jnp.float32)
    h1_steps = []
    # T is small and static: fully unrolled; recurrent state stays in vregs.
    for t in range(T):
        # Layer 0: input contribution pre-computed above (static sublane slice).
        g0 = (xg0[t * Bp:(t + 1) * Bp, :]
              + jnp.dot(h0, whh0_ref[...], preferred_element_type=jnp.float32)
              + b0)
        h0, c0 = gates_to_hc(g0, c0)
        # Layer 1: fuse input + recurrent matmuls into one contraction.
        xh1 = jnp.concatenate([h0, h1], axis=-1)                    # (Bp, 2H)
        g1 = jnp.dot(xh1, w1_ref[...], preferred_element_type=jnp.float32) + b1
        h1, c1 = gates_to_hc(g1, c1)
        h1_steps.append(h1)

    # Fused final Linear: one (Bp, T*H) @ (T*H, Op) matmul; lane-dense single store.
    h_all = jnp.concatenate(h1_steps, axis=-1)                      # (Bp, T*H)
    out = (jnp.dot(h_all, fcw_ref[...], preferred_element_type=jnp.float32)
           + fcb_ref[...])
    out_ref[...] = out.astype(out_ref.dtype)


def lstm_forward(x, params, *, hidden_size, n_seq):
    """x: (B, n_seq, input_size) float32 -> (B, output_size) float32."""
    B, T, I = x.shape
    assert T == n_seq
    H = hidden_size
    O = params["fc_w"].shape[0]

    Bp = _round_up(B, 8)        # sublane-pad the batch
    Op = _round_up(O, 128)      # lane-pad the FC output (unmasked store)

    # ---- weight prep (plain-JAX glue, tiny) ----
    wih0 = params["w_ih_l0"].T                                     # (I, 4H)
    whh0 = params["w_hh_l0"].T                                     # (H, 4H)
    b0 = (params["b_ih_l0"] + params["b_hh_l0"]).reshape(1, 4 * H)
    # Layer 1: stack [W_ih; W_hh] so concat([h0, h1]) @ w1 fuses both contractions.
    w1 = jnp.concatenate([params["w_ih_l1"].T, params["w_hh_l1"].T], axis=0)  # (2H, 4H)
    b1 = (params["b_ih_l1"] + params["b_hh_l1"]).reshape(1, 4 * H)
    fcw = jnp.pad(params["fc_w"].T, ((0, 0), (0, Op - O)))         # (T*H, Op)
    fcb = jnp.pad(params["fc_b"], (0, Op - O)).reshape(1, Op)      # (1, Op)

    # Time-major, batch-padded, flattened so one matmul covers all steps' input path.
    x_tm = jnp.transpose(x, (1, 0, 2))                             # (T, B, I)
    x_tm = jnp.pad(x_tm, ((0, 0), (0, Bp - B), (0, 0)))            # (T, Bp, I)
    x2d = x_tm.reshape(T * Bp, I).astype(jnp.float32)

    full2d = lambda shape: pl.BlockSpec(shape, lambda i: (0, 0))

    out_pad = pl.pallas_call(
        functools.partial(_lstm_fc_kernel, T=T, H=H, Bp=Bp),
        out_shape=jax.ShapeDtypeStruct((Bp, Op), jnp.float32),
        grid=(1,),
        in_specs=[
            full2d((T * Bp, I)),       # x (time-major, flattened)
            full2d((I, 4 * H)),        # W_ih layer 0 (transposed)
            full2d((H, 4 * H)),        # W_hh layer 0 (transposed)
            full2d((1, 4 * H)),        # bias layer 0 (b_ih + b_hh)
            full2d((2 * H, 4 * H)),    # [W_ih; W_hh] layer 1 (transposed, stacked)
            full2d((1, 4 * H)),        # bias layer 1
            full2d((T * H, Op)),       # FC weight (transposed, lane-padded)
            full2d((1, Op)),           # FC bias (lane-padded)
        ],
        out_specs=full2d((Bp, Op)),
        compiler_params=pltpu.CompilerParams(
            dimension_semantics=("arbitrary",)),
    )(x2d, wih0, whh0, b0, w1, b1, fcw, fcb)

    return out_pad[:B, :O]


# ---------------------------------------------------------------------------
# Pure-JAX reference (eval-mode nn.LSTM + nn.Linear semantics) for validation.
# ---------------------------------------------------------------------------
def lstm_reference(x, params, *, hidden_size, n_seq):
    B, T, I = x.shape
    H = hidden_size

    def run_layer(inp, wih, whh, bih, bhh):
        h = jnp.zeros((B, H), jnp.float32)
        c = jnp.zeros((B, H), jnp.float32)
        outs = []
        for t in range(T):
            g = inp[:, t, :] @ wih.T + h @ whh.T + bih + bhh
            i_g = jax.nn.sigmoid(g[:, 0 * H:1 * H])
            f_g = jax.nn.sigmoid(g[:, 1 * H:2 * H])
            g_g = jnp.tanh(g[:, 2 * H:3 * H])
            o_g = jax.nn.sigmoid(g[:, 3 * H:4 * H])
            c = f_g * c + i_g * g_g
            h = o_g * jnp.tanh(c)
            outs.append(h)
        return jnp.stack(outs, axis=1)

    h0 = run_layer(x, params["w_ih_l0"], params["w_hh_l0"],
                   params["b_ih_l0"], params["b_hh_l0"])
    h1 = run_layer(h0, params["w_ih_l1"], params["w_hh_l1"],
                   params["b_ih_l1"], params["b_hh_l1"])
    flat = h1.reshape(B, T * H)
    return flat @ params["fc_w"].T + params["fc_b"]


def init_params(key, input_size, hidden_size, output_size, n_seq):
    H = hidden_size
    k = 1.0 / jnp.sqrt(H)
    names_shapes = [
        ("w_ih_l0", (4 * H, input_size)),
        ("w_hh_l0", (4 * H, H)),
        ("b_ih_l0", (4 * H,)),
        ("b_hh_l0", (4 * H,)),
        ("w_ih_l1", (4 * H, H)),
        ("w_hh_l1", (4 * H, H)),
        ("b_ih_l1", (4 * H,)),
        ("b_hh_l1", (4 * H,)),
        ("fc_w", (output_size, n_seq * H)),
        ("fc_b", (output_size,)),
    ]
    params = {}
    keys = jax.random.split(key, len(names_shapes))
    for kk, (name, shape) in zip(keys, names_shapes):
        params[name] = jax.random.uniform(kk, shape, jnp.float32, -k, k)
    return params


if __name__ == "__main__":
    input_size, hidden_size, output_size, n_seq = 16, 32, 10, 8
    batch = 2

    key = jax.random.PRNGKey(0)
    kx, kp = jax.random.split(key)
    x = jax.random.normal(kx, (batch, n_seq, input_size), jnp.float32)
    params = init_params(kp, input_size, hidden_size, output_size, n_seq)

    out = lstm_forward(x, params, hidden_size=hidden_size, n_seq=n_seq)
    out = jax.block_until_ready(out)

    ref = lstm_reference(x, params, hidden_size=hidden_size, n_seq=n_seq)
    assert out.shape == (batch, output_size)
    assert jnp.allclose(out, ref, atol=1e-4, rtol=1e-4), (out, ref)

    print("KERNEL_OK")
</pallas_src>

<mosaic_0001>
module attributes {stable_mosaic.version = 11 : i64} {
  func.func @_lstm_fc_kernel(%arg0: i32, %arg1: memref<64x16xf32, #tpu.memory_space<vmem>>, %arg2: memref<16x128xf32, #tpu.memory_space<vmem>>, %arg3: memref<32x128xf32, #tpu.memory_space<vmem>>, %arg4: memref<1x128xf32, #tpu.memory_space<vmem>>, %arg5: memref<64x128xf32, #tpu.memory_space<vmem>>, %arg6: memref<1x128xf32, #tpu.memory_space<vmem>>, %arg7: memref<256x128xf32, #tpu.memory_space<vmem>>, %arg8: memref<1x128xf32, #tpu.memory_space<vmem>>, %arg9: memref<8x128xf32, #tpu.memory_space<vmem>>) attributes {dimension_semantics = [#tpu.dimension_semantics<arbitrary>], iteration_bounds = array<i64: 1>, scalar_prefetch = 0 : i64, scratch_operands = 0 : i64, tpu.core_type = #tpu.core_type<tc>, window_params = [{pipeline_mode = #tpu.pipeline_mode<synchronous>, transform_indices = @transform_0, window_bounds = array<i64: 64, 16>}, {pipeline_mode = #tpu.pipeline_mode<synchronous>, transform_indices = @transform_1, window_bounds = array<i64: 16, 128>}, {pipeline_mode = #tpu.pipeline_mode<synchronous>, transform_indices = @transform_2, window_bounds = array<i64: 32, 128>}, {pipeline_mode = #tpu.pipeline_mode<synchronous>, transform_indices = @transform_3, window_bounds = array<i64: 1, 128>}, {pipeline_mode = #tpu.pipeline_mode<synchronous>, transform_indices = @transform_4, window_bounds = array<i64: 64, 128>}, {pipeline_mode = #tpu.pipeline_mode<synchronous>, transform_indices = @transform_5, window_bounds = array<i64: 1, 128>}, {pipeline_mode = #tpu.pipeline_mode<synchronous>, transform_indices = @transform_6, window_bounds = array<i64: 256, 128>}, {pipeline_mode = #tpu.pipeline_mode<synchronous>, transform_indices = @transform_7, window_bounds = array<i64: 1, 128>}, {pipeline_mode = #tpu.pipeline_mode<synchronous>, transform_indices = @transform_8, window_bounds = array<i64: 8, 128>}]} {
    %c0 = arith.constant 0 : index
    %c0_0 = arith.constant 0 : index
    %0 = vector.load %arg4[%c0, %c0_0] : memref<1x128xf32, #tpu.memory_space<vmem>>, vector<1x128xf32>
    %1 = vector.shape_cast %0 : vector<1x128xf32> to vector<1x128xf32>
    %2 = vector.broadcast %1 : vector<1x128xf32> to vector<8x128xf32>
    %c0_1 = arith.constant 0 : index
    %c0_2 = arith.constant 0 : index
    %3 = vector.load %arg6[%c0_1, %c0_2] : memref<1x128xf32, #tpu.memory_space<vmem>>, vector<1x128xf32>
    %4 = vector.shape_cast %3 : vector<1x128xf32> to vector<1x128xf32>
    %5 = vector.broadcast %4 : vector<1x128xf32> to vector<8x128xf32>
    %c0_3 = arith.constant 0 : index
    %c0_4 = arith.constant 0 : index
    %6 = vector.load %arg1[%c0_3, %c0_4] : memref<64x16xf32, #tpu.memory_space<vmem>>, vector<64x16xf32>
    %c0_5 = arith.constant 0 : index
    %c0_6 = arith.constant 0 : index
    %7 = vector.load %arg2[%c0_5, %c0_6] : memref<16x128xf32, #tpu.memory_space<vmem>>, vector<16x128xf32>
    %cst = arith.constant dense<0.000000e+00> : vector<64x128xf32>
    %8 = tpu.matmul %6, %7, %cst {dimension_numbers = #tpu.dot_dimension_numbers<[1], [0], [0], [1], [0, 0, 1, 1], [], []>} : vector<64x16xf32>, vector<16x128xf32>, vector<64x128xf32> -> vector<64x128xf32>
    %cst_7 = arith.constant 0.000000e+00 : f32
    %9 = vector.broadcast %cst_7 : f32 to vector<8x32xf32>
    %cst_8 = arith.constant 0.000000e+00 : f32
    %10 = vector.broadcast %cst_8 : f32 to vector<8x32xf32>
    %cst_9 = arith.constant 0.000000e+00 : f32
    %11 = vector.broadcast %cst_9 : f32 to vector<8x32xf32>
    %cst_10 = arith.constant 0.000000e+00 : f32
    %12 = vector.broadcast %cst_10 : f32 to vector<8x32xf32>
    %13 = vector.extract_strided_slice %8 {offsets = [0, 0], sizes = [8, 128], strides = [1, 1]} : vector<64x128xf32> to vector<8x128xf32>
    %c0_11 = arith.constant 0 : index
    %c0_12 = arith.constant 0 : index
    %14 = vector.load %arg3[%c0_11, %c0_12] : memref<32x128xf32, #tpu.memory_space<vmem>>, vector<32x128xf32>
    %cst_13 = arith.constant dense<0.000000e+00> : vector<8x128xf32>
    %15 = tpu.matmul %9, %14, %cst_13 {dimension_numbers = #tpu.dot_dimension_numbers<[1], [0], [0], [1], [0, 0, 1, 1], [], []>} : vector<8x32xf32>, vector<32x128xf32>, vector<8x128xf32> -> vector<8x128xf32>
    %16 = arith.addf %13, %15 : vector<8x128xf32>
    %17 = arith.addf %16, %2 : vector<8x128xf32>
    %18 = vector.extract_strided_slice %17 {offsets = [0, 0], sizes = [8, 32], strides = [1, 1]} : vector<8x128xf32> to vector<8x32xf32>
    %19 = arith.negf %18 : vector<8x32xf32>
    %20 = math.exp %19 : vector<8x32xf32>
    %cst_14 = arith.constant 1.000000e+00 : f32
    %21 = vector.broadcast %cst_14 : f32 to vector<8x32xf32>
    %22 = arith.addf %21, %20 : vector<8x32xf32>
    %23 = arith.divf %21, %22 : vector<8x32xf32>
    %24 = vector.extract_strided_slice %17 {offsets = [0, 32], sizes = [8, 32], strides = [1, 1]} : vector<8x128xf32> to vector<8x32xf32>
    %25 = arith.negf %24 : vector<8x32xf32>
    %26 = math.exp %25 : vector<8x32xf32>
    %cst_15 = arith.constant 1.000000e+00 : f32
    %27 = vector.broadcast %cst_15 : f32 to vector<8x32xf32>
    %28 = arith.addf %27, %26 : vector<8x32xf32>
    %29 = arith.divf %27, %28 : vector<8x32xf32>
    %30 = vector.extract_strided_slice %17 {offsets = [0, 64], sizes = [8, 32], strides = [1, 1]} : vector<8x128xf32> to vector<8x32xf32>
    %31 = math.tanh %30 : vector<8x32xf32>
    %32 = vector.extract_strided_slice %17 {offsets = [0, 96], sizes = [8, 32], strides = [1, 1]} : vector<8x128xf32> to vector<8x32xf32>
    %33 = arith.negf %32 : vector<8x32xf32>
    %34 = math.exp %33 : vector<8x32xf32>
    %cst_16 = arith.constant 1.000000e+00 : f32
    %35 = vector.broadcast %cst_16 : f32 to vector<8x32xf32>
    %36 = arith.addf %35, %34 : vector<8x32xf32>
    %37 = arith.divf %35, %36 : vector<8x32xf32>
    %38 = arith.mulf %29, %10 : vector<8x32xf32>
    %39 = arith.mulf %23, %31 : vector<8x32xf32>
    %40 = arith.addf %38, %39 : vector<8x32xf32>
    %41 = math.tanh %40 : vector<8x32xf32>
    %42 = arith.mulf %37, %41 : vector<8x32xf32>
    %43 = tpu.concatenate %42, %11 in 1 : vector<8x32xf32>, vector<8x32xf32> -> vector<8x64xf32>
    %c0_17 = arith.constant 0 : index
    %c0_18 = arith.constant 0 : index
    %44 = vector.load %arg5[%c0_17, %c0_18] : memref<64x128xf32, #tpu.memory_space<vmem>>, vector<64x128xf32>
    %cst_19 = arith.constant dense<0.000000e+00> : vector<8x128xf32>
    %45 = tpu.matmul %43, %44, %cst_19 {dimension_numbers = #tpu.dot_dimension_numbers<[1], [0], [0], [1], [0, 0, 1, 1], [], []>} : vector<8x64xf32>, vector<64x128xf32>, vector<8x128xf32> -> vector<8x128xf32>
    %46 = arith.addf %45, %5 : vector<8x128xf32>
    %47 = vector.extract_strided_slice %46 {offsets = [0, 0], sizes = [8, 32], strides = [1, 1]} : vector<8x128xf32> to vector<8x32xf32>
    %48 = arith.negf %47 : vector<8x32xf32>
    %49 = math.exp %48 : vector<8x32xf32>
    %cst_20 = arith.constant 1.000000e+00 : f32
    %50 = vector.broadcast %cst_20 : f32 to vector<8x32xf32>
    %51 = arith.addf %50, %49 : vector<8x32xf32>
    %52 = arith.divf %50, %51 : vector<8x32xf32>
    %53 = vector.extract_strided_slice %46 {offsets = [0, 32], sizes = [8, 32], strides = [1, 1]} : vector<8x128xf32> to vector<8x32xf32>
    %54 = arith.negf %53 : vector<8x32xf32>
    %55 = math.exp %54 : vector<8x32xf32>
    %cst_21 = arith.constant 1.000000e+00 : f32
    %56 = vector.broadcast %cst_21 : f32 to vector<8x32xf32>
    %57 = arith.addf %56, %55 : vector<8x32xf32>
    %58 = arith.divf %56, %57 : vector<8x32xf32>
    %59 = vector.extract_strided_slice %46 {offsets = [0, 64], sizes = [8, 32], strides = [1, 1]} : vector<8x128xf32> to vector<8x32xf32>
    %60 = math.tanh %59 : vector<8x32xf32>
    %61 = vector.extract_strided_slice %46 {offsets = [0, 96], sizes = [8, 32], strides = [1, 1]} : vector<8x128xf32> to vector<8x32xf32>
    %62 = arith.negf %61 : vector<8x32xf32>
    %63 = math.exp %62 : vector<8x32xf32>
    %cst_22 = arith.constant 1.000000e+00 : f32
    %64 = vector.broadcast %cst_22 : f32 to vector<8x32xf32>
    %65 = arith.addf %64, %63 : vector<8x32xf32>
    %66 = arith.divf %64, %65 : vector<8x32xf32>
    %67 = arith.mulf %58, %12 : vector<8x32xf32>
    %68 = arith.mulf %52, %60 : vector<8x32xf32>
    %69 = arith.addf %67, %68 : vector<8x32xf32>
    %70 = math.tanh %69 : vector<8x32xf32>
    %71 = arith.mulf %66, %70 : vector<8x32xf32>
    %72 = vector.extract_strided_slice %8 {offsets = [8, 0], sizes = [8, 128], strides = [1, 1]} : vector<64x128xf32> to vector<8x128xf32>
    %c0_23 = arith.constant 0 : index
    %c0_24 = arith.constant 0 : index
    %73 = vector.load %arg3[%c0_23, %c0_24] : memref<32x128xf32, #tpu.memory_space<vmem>>, vector<32x128xf32>
    %cst_25 = arith.constant dense<0.000000e+00> : vector<8x128xf32>
    %74 = tpu.matmul %42, %73, %cst_25 {dimension_numbers = #tpu.dot_dimension_numbers<[1], [0], [0], [1], [0, 0, 1, 1], [], []>} : vector<8x32xf32>, vector<32x128xf32>, vector<8x128xf32> -> vector<8x128xf32>
    %75 = arith.addf %72, %74 : vector<8x128xf32>
    %76 = arith.addf %75, %2 : vector<8x128xf32>
    %77 = vector.extract_strided_slice %76 {offsets = [0, 0], sizes = [8, 32], strides = [1, 1]} : vector<8x128xf32> to vector<8x32xf32>
    %78 = arith.negf %77 : vector<8x32xf32>
    %79 = math.exp %78 : vector<8x32xf32>
    %cst_26 = arith.constant 1.000000e+00 : f32
    %80 = vector.broadcast %cst_26 : f32 to vector<8x32xf32>
    %81 = arith.addf %80, %79 : vector<8x32xf32>
    %82 = arith.divf %80, %81 : vector<8x32xf32>
    %83 = vector.extract_strided_slice %76 {offsets = [0, 32], sizes = [8, 32], strides = [1, 1]} : vector<8x128xf32> to vector<8x32xf32>
    %84 = arith.negf %83 : vector<8x32xf32>
    %85 = math.exp %84 : vector<8x32xf32>
    %cst_27 = arith.constant 1.000000e+00 : f32
    %86 = vector.broadcast %cst_27 : f32 to vector<8x32xf32>
    %87 = arith.addf %86, %85 : vector<8x32xf32>
    %88 = arith.divf %86, %87 : vector<8x32xf32>
    %89 = vector.extract_strided_slice %76 {offsets = [0, 64], sizes = [8, 32], strides = [1, 1]} : vector<8x128xf32> to vector<8x32xf32>
    %90 = math.tanh %89 : vector<8x32xf32>
    %91 = vector.extract_strided_slice %76 {offsets = [0, 96], sizes = [8, 32], strides = [1, 1]} : vector<8x128xf32> to vector<8x32xf32>
    %92 = arith.negf %91 : vector<8x32xf32>
    %93 = math.exp %92 : vector<8x32xf32>
    %cst_28 = arith.constant 1.000000e+00 : f32
    %94 = vector.broadcast %cst_28 : f32 to vector<8x32xf32>
    %95 = arith.addf %94, %93 : vector<8x32xf32>
    %96 = arith.divf %94, %95 : vector<8x32xf32>
    %97 = arith.mulf %88, %40 : vector<8x32xf32>
    %98 = arith.mulf %82, %90 : vector<8x32xf32>
    %99 = arith.addf %97, %98 : vector<8x32xf32>
    %100 = math.tanh %99 : vector<8x32xf32>
    %101 = arith.mulf %96, %100 : vector<8x32xf32>
    %102 = tpu.concatenate %101, %71 in 1 : vector<8x32xf32>, vector<8x32xf32> -> vector<8x64xf32>
    %c0_29 = arith.constant 0 : index
    %c0_30 = arith.constant 0 : index
    %103 = vector.load %arg5[%c0_29, %c0_30] : memref<64x128xf32, #tpu.memory_space<vmem>>, vector<64x128xf32>
    %cst_31 = arith.constant dense<0.000000e+00> : vector<8x128xf32>
    %104 = tpu.matmul %102, %103, %cst_31 {dimension_numbers = #tpu.dot_dimension_numbers<[1], [0], [0], [1], [0, 0, 1, 1], [], []>} : vector<8x64xf32>, vector<64x128xf32>, vector<8x128xf32> -> vector<8x128xf32>
    %105 = arith.addf %104, %5 : vector<8x128xf32>
    %106 = vector.extract_strided_slice %105 {offsets = [0, 0], sizes = [8, 32], strides = [1, 1]} : vector<8x128xf32> to vector<8x32xf32>
    %107 = arith.negf %106 : vector<8x32xf32>
    %108 = math.exp %107 : vector<8x32xf32>
    %cst_32 = arith.constant 1.000000e+00 : f32
    %109 = vector.broadcast %cst_32 : f32 to vector<8x32xf32>
    %110 = arith.addf %109, %108 : vector<8x32xf32>
    %111 = arith.divf %109, %110 : vector<8x32xf32>
    %112 = vector.extract_strided_slice %105 {offsets = [0, 32], sizes = [8, 32], strides = [1, 1]} : vector<8x128xf32> to vector<8x32xf32>
    %113 = arith.negf %112 : vector<8x32xf32>
    %114 = math.exp %113 : vector<8x32xf32>
    %cst_33 = arith.constant 1.000000e+00 : f32
    %115 = vector.broadcast %cst_33 : f32 to vector<8x32xf32>
    %116 = arith.addf %115, %114 : vector<8x32xf32>
    %117 = arith.divf %115, %116 : vector<8x32xf32>
    %118 = vector.extract_strided_slice %105 {offsets = [0, 64], sizes = [8, 32], strides = [1, 1]} : vector<8x128xf32> to vector<8x32xf32>
    %119 = math.tanh %118 : vector<8x32xf32>
    %120 = vector.extract_strided_slice %105 {offsets = [0, 96], sizes = [8, 32], strides = [1, 1]} : vector<8x128xf32> to vector<8x32xf32>
    %121 = arith.negf %120 : vector<8x32xf32>
    %122 = math.exp %121 : vector<8x32xf32>
    %cst_34 = arith.constant 1.000000e+00 : f32
    %123 = vector.broadcast %cst_34 : f32 to vector<8x32xf32>
    %124 = arith.addf %123, %122 : vector<8x32xf32>
    %125 = arith.divf %123, %124 : vector<8x32xf32>
    %126 = arith.mulf %117, %69 : vector<8x32xf32>
    %127 = arith.mulf %111, %119 : vector<8x32xf32>
    %128 = arith.addf %126, %127 : vector<8x32xf32>
    %129 = math.tanh %128 : vector<8x32xf32>
    %130 = arith.mulf %125, %129 : vector<8x32xf32>
    %131 = vector.extract_strided_slice %8 {offsets = [16, 0], sizes = [8, 128], strides = [1, 1]} : vector<64x128xf32> to vector<8x128xf32>
    %c0_35 = arith.constant 0 : index
    %c0_36 = arith.constant 0 : index
    %132 = vector.load %arg3[%c0_35, %c0_36] : memref<32x128xf32, #tpu.memory_space<vmem>>, vector<32x128xf32>
    %cst_37 = arith.constant dense<0.000000e+00> : vector<8x128xf32>
    %133 = tpu.matmul %101, %132, %cst_37 {dimension_numbers = #tpu.dot_dimension_numbers<[1], [0], [0], [1], [0, 0, 1, 1], [], []>} : vector<8x32xf32>, vector<32x128xf32>, vector<8x128xf32> -> vector<8x128xf32>
    %134 = arith.addf %131, %133 : vector<8x128xf32>
    %135 = arith.addf %134, %2 : vector<8x128xf32>
    %136 = vector.extract_strided_slice %135 {offsets = [0, 0], sizes = [8, 32], strides = [1, 1]} : vector<8x128xf32> to vector<8x32xf32>
    %137 = arith.negf %136 : vector<8x32xf32>
    %138 = math.exp %137 : vector<8x32xf32>
    %cst_38 = arith.constant 1.000000e+00 : f32
    %139 = vector.broadcast %cst_38 : f32 to vector<8x32xf32>
    %140 = arith.addf %139, %138 : vector<8x32xf32>
    %141 = arith.divf %139, %140 : vector<8x32xf32>
    %142 = vector.extract_strided_slice %135 {offsets = [0, 32], sizes = [8, 32], strides = [1, 1]} : vector<8x128xf32> to vector<8x32xf32>
    %143 = arith.negf %142 : vector<8x32xf32>
    %144 = math.exp %143 : vector<8x32xf32>
    %cst_39 = arith.constant 1.000000e+00 : f32
    %145 = vector.broadcast %cst_39 : f32 to vector<8x32xf32>
    %146 = arith.addf %145, %144 : vector<8x32xf32>
    %147 = arith.divf %145, %146 : vector<8x32xf32>
    %148 = vector.extract_strided_slice %135 {offsets = [0, 64], sizes = [8, 32], strides = [1, 1]} : vector<8x128xf32> to vector<8x32xf32>
    %149 = math.tanh %148 : vector<8x32xf32>
    %150 = vector.extract_strided_slice %135 {offsets = [0, 96], sizes = [8, 32], strides = [1, 1]} : vector<8x128xf32> to vector<8x32xf32>
    %151 = arith.negf %150 : vector<8x32xf32>
    %152 = math.exp %151 : vector<8x32xf32>
    %cst_40 = arith.constant 1.000000e+00 : f32
    %153 = vector.broadcast %cst_40 : f32 to vector<8x32xf32>
    %154 = arith.addf %153, %152 : vector<8x32xf32>
    %155 = arith.divf %153, %154 : vector<8x32xf32>
    %156 = arith.mulf %147, %99 : vector<8x32xf32>
    %157 = arith.mulf %141, %149 : vector<8x32xf32>
    %158 = arith.addf %156, %157 : vector<8x32xf32>
    %159 = math.tanh %158 : vector<8x32xf32>
    %160 = arith.mulf %155, %159 : vector<8x32xf32>
    %161 = tpu.concatenate %160, %130 in 1 : vector<8x32xf32>, vector<8x32xf32> -> vector<8x64xf32>
    %c0_41 = arith.constant 0 : index
    %c0_42 = arith.constant 0 : index
    %162 = vector.load %arg5[%c0_41, %c0_42] : memref<64x128xf32, #tpu.memory_space<vmem>>, vector<64x128xf32>
    %cst_43 = arith.constant dense<0.000000e+00> : vector<8x128xf32>
    %163 = tpu.matmul %161, %162, %cst_43 {dimension_numbers = #tpu.dot_dimension_numbers<[1], [0], [0], [1], [0, 0, 1, 1], [], []>} : vector<8x64xf32>, vector<64x128xf32>, vector<8x128xf32> -> vector<8x128xf32>
    %164 = arith.addf %163, %5 : vector<8x128xf32>
    %165 = vector.extract_strided_slice %164 {offsets = [0, 0], sizes = [8, 32], strides = [1, 1]} : vector<8x128xf32> to vector<8x32xf32>
    %166 = arith.negf %165 : vector<8x32xf32>
    %167 = math.exp %166 : vector<8x32xf32>
    %cst_44 = arith.constant 1.000000e+00 : f32
    %168 = vector.broadcast %cst_44 : f32 to vector<8x32xf32>
    %169 = arith.addf %168, %167 : vector<8x32xf32>
    %170 = arith.divf %168, %169 : vector<8x32xf32>
    %171 = vector.extract_strided_slice %164 {offsets = [0, 32], sizes = [8, 32], strides = [1, 1]} : vector<8x128xf32> to vector<8x32xf32>
    %172 = arith.negf %171 : vector<8x32xf32>
    %173 = math.exp %172 : vector<8x32xf32>
    %cst_45 = arith.constant 1.000000e+00 : f32
    %174 = vector.broadcast %cst_45 : f32 to vector<8x32xf32>
    %175 = arith.addf %174, %173 : vector<8x32xf32>
    %176 = arith.divf %174, %175 : vector<8x32xf32>
    %177 = vector.extract_strided_slice %164 {offsets = [0, 64], sizes = [8, 32], strides = [1, 1]} : vector<8x128xf32> to vector<8x32xf32>
    %178 = math.tanh %177 : vector<8x32xf32>
    %179 = vector.extract_strided_slice %164 {offsets = [0, 96], sizes = [8, 32], strides = [1, 1]} : vector<8x128xf32> to vector<8x32xf32>
    %180 = arith.negf %179 : vector<8x32xf32>
    %181 = math.exp %180 : vector<8x32xf32>
    %cst_46 = arith.constant 1.000000e+00 : f32
    %182 = vector.broadcast %cst_46 : f32 to vector<8x32xf32>
    %183 = arith.addf %182, %181 : vector<8x32xf32>
    %184 = arith.divf %182, %183 : vector<8x32xf32>
    %185 = arith.mulf %176, %128 : vector<8x32xf32>
    %186 = arith.mulf %170, %178 : vector<8x32xf32>
    %187 = arith.addf %185, %186 : vector<8x32xf32>
    %188 = math.tanh %187 : vector<8x32xf32>
    %189 = arith.mulf %184, %188 : vector<8x32xf32>
    %190 = vector.extract_strided_slice %8 {offsets = [24, 0], sizes = [8, 128], strides = [1, 1]} : vector<64x128xf32> to vector<8x128xf32>
    %c0_47 = arith.constant 0 : index
    %c0_48 = arith.constant 0 : index
    %191 = vector.load %arg3[%c0_47, %c0_48] : memref<32x128xf32, #tpu.memory_space<vmem>>, vector<32x128xf32>
    %cst_49 = arith.constant dense<0.000000e+00> : vector<8x128xf32>
    %192 = tpu.matmul %160, %191, %cst_49 {dimension_numbers = #tpu.dot_dimension_numbers<[1], [0], [0], [1], [0, 0, 1, 1], [], []>} : vector<8x32xf32>, vector<32x128xf32>, vector<8x128xf32> -> vector<8x128xf32>
    %193 = arith.addf %190, %192 : vector<8x128xf32>
    %194 = arith.addf %193, %2 : vector<8x128xf32>
    %195 = vector.extract_strided_slice %194 {offsets = [0, 0], sizes = [8, 32], strides = [1, 1]} : vector<8x128xf32> to vector<8x32xf32>
    %196 = arith.negf %195 : vector<8x32xf32>
    %197 = math.exp %196 : vector<8x32xf32>
    %cst_50 = arith.constant 1.000000e+00 : f32
    %198 = vector.broadcast %cst_50 : f32 to vector<8x32xf32>
    %199 = arith.addf %198, %197 : vector<8x32xf32>
    %200 = arith.divf %198, %199 : vector<8x32xf32>
    %201 = vector.extract_strided_slice %194 {offsets = [0, 32], sizes = [8, 32], strides = [1, 1]} : vector<8x128xf32> to vector<8x32xf32>
    %202 = arith.negf %201 : vector<8x32xf32>
    %203 = math.exp %202 : vector<8x32xf32>
    %cst_51 = arith.constant 1.000000e+00 : f32
    %204 = vector.broadcast %cst_51 : f32 to vector<8x32xf32>
    %205 = arith.addf %204, %203 : vector<8x32xf32>
    %206 = arith.divf %204, %205 : vector<8x32xf32>
    %207 = vector.extract_strided_slice %194 {offsets = [0, 64], sizes = [8, 32], strides = [1, 1]} : vector<8x128xf32> to vector<8x32xf32>
    %208 = math.tanh %207 : vector<8x32xf32>
    %209 = vector.extract_strided_slice %194 {offsets = [0, 96], sizes = [8, 32], strides = [1, 1]} : vector<8x128xf32> to vector<8x32xf32>
    %210 = arith.negf %209 : vector<8x32xf32>
    %211 = math.exp %210 : vector<8x32xf32>
    %cst_52 = arith.constant 1.000000e+00 : f32
    %212 = vector.broadcast %cst_52 : f32 to vector<8x32xf32>
    %213 = arith.addf %212, %211 : vector<8x32xf32>
    %214 = arith.divf %212, %213 : vector<8x32xf32>
    %215 = arith.mulf %206, %158 : vector<8x32xf32>
    %216 = arith.mulf %200, %208 : vector<8x32xf32>
    %217 = arith.addf %215, %216 : vector<8x32xf32>
    %218 = math.tanh %217 : vector<8x32xf32>
    %219 = arith.mulf %214, %218 : vector<8x32xf32>
    %220 = tpu.concatenate %219, %189 in 1 : vector<8x32xf32>, vector<8x32xf32> -> vector<8x64xf32>
    %c0_53 = arith.constant 0 : index
    %c0_54 = arith.constant 0 : index
    %221 = vector.load %arg5[%c0_53, %c0_54] : memref<64x128xf32, #tpu.memory_space<vmem>>, vector<64x128xf32>
    %cst_55 = arith.constant dense<0.000000e+00> : vector<8x128xf32>
    %222 = tpu.matmul %220, %221, %cst_55 {dimension_numbers = #tpu.dot_dimension_numbers<[1], [0], [0], [1], [0, 0, 1, 1], [], []>} : vector<8x64xf32>, vector<64x128xf32>, vector<8x128xf32> -> vector<8x128xf32>
    %223 = arith.addf %222, %5 : vector<8x128xf32>
    %224 = vector.extract_strided_slice %223 {offsets = [0, 0], sizes = [8, 32], strides = [1, 1]} : vector<8x128xf32> to vector<8x32xf32>
    %225 = arith.negf %224 : vector<8x32xf32>
    %226 = math.exp %225 : vector<8x32xf32>
    %cst_56 = arith.constant 1.000000e+00 : f32
    %227 = vector.broadcast %cst_56 : f32 to vector<8x32xf32>
    %228 = arith.addf %227, %226 : vector<8x32xf32>
    %229 = arith.divf %227, %228 : vector<8x32xf32>
    %230 = vector.extract_strided_slice %223 {offsets = [0, 32], sizes = [8, 32], strides = [1, 1]} : vector<8x128xf32> to vector<8x32xf32>
    %231 = arith.negf %230 : vector<8x32xf32>
    %232 = math.exp %231 : vector<8x32xf32>
    %cst_57 = arith.constant 1.000000e+00 : f32
    %233 = vector.broadcast %cst_57 : f32 to vector<8x32xf32>
    %234 = arith.addf %233, %232 : vector<8x32xf32>
    %235 = arith.divf %233, %234 : vector<8x32xf32>
    %236 = vector.extract_strided_slice %223 {offsets = [0, 64], sizes = [8, 32], strides = [1, 1]} : vector<8x128xf32> to vector<8x32xf32>
    %237 = math.tanh %236 : vector<8x32xf32>
    %238 = vector.extract_strided_slice %223 {offsets = [0, 96], sizes = [8, 32], strides = [1, 1]} : vector<8x128xf32> to vector<8x32xf32>
    %239 = arith.negf %238 : vector<8x32xf32>
    %240 = math.exp %239 : vector<8x32xf32>
    %cst_58 = arith.constant 1.000000e+00 : f32
    %241 = vector.broadcast %cst_58 : f32 to vector<8x32xf32>
    %242 = arith.addf %241, %240 : vector<8x32xf32>
    %243 = arith.divf %241, %242 : vector<8x32xf32>
    %244 = arith.mulf %235, %187 : vector<8x32xf32>
    %245 = arith.mulf %229, %237 : vector<8x32xf32>
    %246 = arith.addf %244, %245 : vector<8x32xf32>
    %247 = math.tanh %246 : vector<8x32xf32>
    %248 = arith.mulf %243, %247 : vector<8x32xf32>
    %249 = vector.extract_strided_slice %8 {offsets = [32, 0], sizes = [8, 128], strides = [1, 1]} : vector<64x128xf32> to vector<8x128xf32>
    %c0_59 = arith.constant 0 : index
    %c0_60 = arith.constant 0 : index
    %250 = vector.load %arg3[%c0_59, %c0_60] : memref<32x128xf32, #tpu.memory_space<vmem>>, vector<32x128xf32>
    %cst_61 = arith.constant dense<0.000000e+00> : vector<8x128xf32>
    %251 = tpu.matmul %219, %250, %cst_61 {dimension_numbers = #tpu.dot_dimension_numbers<[1], [0], [0], [1], [0, 0, 1, 1], [], []>} : vector<8x32xf32>, vector<32x128xf32>, vector<8x128xf32> -> vector<8x128xf32>
    %252 = arith.addf %249, %251 : vector<8x128xf32>
    %253 = arith.addf %252, %2 : vector<8x128xf32>
    %254 = vector.extract_strided_slice %253 {offsets = [0, 0], sizes = [8, 32], strides = [1, 1]} : vector<8x128xf32> to vector<8x32xf32>
    %255 = arith.negf %254 : vector<8x32xf32>
    %256 = math.exp %255 : vector<8x32xf32>
    %cst_62 = arith.constant 1.000000e+00 : f32
    %257 = vector.broadcast %cst_62 : f32 to vector<8x32xf32>
    %258 = arith.addf %257, %256 : vector<8x32xf32>
    %259 = arith.divf %257, %258 : vector<8x32xf32>
    %260 = vector.extract_strided_slice %253 {offsets = [0, 32], sizes = [8, 32], strides = [1, 1]} : vector<8x128xf32> to vector<8x32xf32>
    %261 = arith.negf %260 : vector<8x32xf32>
    %262 = math.exp %261 : vector<8x32xf32>
    %cst_63 = arith.constant 1.000000e+00 : f32
    %263 = vector.broadcast %cst_63 : f32 to vector<8x32xf32>
    %264 = arith.addf %263, %262 : vector<8x32xf32>
    %265 = arith.divf %263, %264 : vector<8x32xf32>
    %266 = vector.extract_strided_slice %253 {offsets = [0, 64], sizes = [8, 32], strides = [1, 1]} : vector<8x128xf32> to vector<8x32xf32>
    %267 = math.tanh %266 : vector<8x32xf32>
    %268 = vector.extract_strided_slice %253 {offsets = [0, 96], sizes = [8, 32], strides = [1, 1]} : vector<8x128xf32> to vector<8x32xf32>
    %269 = arith.negf %268 : vector<8x32xf32>
    %270 = math.exp %269 : vector<8x32xf32>
    %cst_64 = arith.constant 1.000000e+00 : f32
    %271 = vector.broadcast %cst_64 : f32 to vector<8x32xf32>
    %272 = arith.addf %271, %270 : vector<8x32xf32>
    %273 = arith.divf %271, %272 : vector<8x32xf32>
    %274 = arith.mulf %265, %217 : vector<8x32xf32>
    %275 = arith.mulf %259, %267 : vector<8x32xf32>
    %276 = arith.addf %274, %275 : vector<8x32xf32>
    %277 = math.tanh %276 : vector<8x32xf32>
    %278 = arith.mulf %273, %277 : vector<8x32xf32>
    %279 = tpu.concatenate %278, %248 in 1 : vector<8x32xf32>, vector<8x32xf32> -> vector<8x64xf32>
    %c0_65 = arith.constant 0 : index
    %c0_66 = arith.constant 0 : index
    %280 = vector.load %arg5[%c0_65, %c0_66] : memref<64x128xf32, #tpu.memory_space<vmem>>, vector<64x128xf32>
    %cst_67 = arith.constant dense<0.000000e+00> : vector<8x128xf32>
    %281 = tpu.matmul %279, %280, %cst_67 {dimension_numbers = #tpu.dot_dimension_numbers<[1], [0], [0], [1], [0, 0, 1, 1], [], []>} : vector<8x64xf32>, vector<64x128xf32>, vector<8x128xf32> -> vector<8x128xf32>
    %282 = arith.addf %281, %5 : vector<8x128xf32>
    %283 = vector.extract_strided_slice %282 {offsets = [0, 0], sizes = [8, 32], strides = [1, 1]} : vector<8x128xf32> to vector<8x32xf32>
    %284 = arith.negf %283 : vector<8x32xf32>
    %285 = math.exp %284 : vector<8x32xf32>
    %cst_68 = arith.constant 1.000000e+00 : f32
    %286 = vector.broadcast %cst_68 : f32 to vector<8x32xf32>
    %287 = arith.addf %286, %285 : vector<8x32xf32>
    %288 = arith.divf %286, %287 : vector<8x32xf32>
    %289 = vector.extract_strided_slice %282 {offsets = [0, 32], sizes = [8, 32], strides = [1, 1]} : vector<8x128xf32> to vector<8x32xf32>
    %290 = arith.negf %289 : vector<8x32xf32>
    %291 = math.exp %290 : vector<8x32xf32>
    %cst_69 = arith.constant 1.000000e+00 : f32
    %292 = vector.broadcast %cst_69 : f32 to vector<8x32xf32>
    %293 = arith.addf %292, %291 : vector<8x32xf32>
    %294 = arith.divf %292, %293 : vector<8x32xf32>
    %295 = vector.extract_strided_slice %282 {offsets = [0, 64], sizes = [8, 32], strides = [1, 1]} : vector<8x128xf32> to vector<8x32xf32>
    %296 = math.tanh %295 : vector<8x32xf32>
    %297 = vector.extract_strided_slice %282 {offsets = [0, 96], sizes = [8, 32], strides = [1, 1]} : vector<8x128xf32> to vector<8x32xf32>
    %298 = arith.negf %297 : vector<8x32xf32>
    %299 = math.exp %298 : vector<8x32xf32>
    %cst_70 = arith.constant 1.000000e+00 : f32
    %300 = vector.broadcast %cst_70 : f32 to vector<8x32xf32>
    %301 = arith.addf %300, %299 : vector<8x32xf32>
    %302 = arith.divf %300, %301 : vector<8x32xf32>
    %303 = arith.mulf %294, %246 : vector<8x32xf32>
    %304 = arith.mulf %288, %296 : vector<8x32xf32>
    %305 = arith.addf %303, %304 : vector<8x32xf32>
    %306 = math.tanh %305 : vector<8x32xf32>
    %307 = arith.mulf %302, %306 : vector<8x32xf32>
    %308 = vector.extract_strided_slice %8 {offsets = [40, 0], sizes = [8, 128], strides = [1, 1]} : vector<64x128xf32> to vector<8x128xf32>
    %c0_71 = arith.constant 0 : index
    %c0_72 = arith.constant 0 : index
    %309 = vector.load %arg3[%c0_71, %c0_72] : memref<32x128xf32, #tpu.memory_space<vmem>>, vector<32x128xf32>
    %cst_73 = arith.constant dense<0.000000e+00> : vector<8x128xf32>
    %310 = tpu.matmul %278, %309, %cst_73 {dimension_numbers = #tpu.dot_dimension_numbers<[1], [0], [0], [1], [0, 0, 1, 1], [], []>} : vector<8x32xf32>, vector<32x128xf32>, vector<8x128xf32> -> vector<8x128xf32>
    %311 = arith.addf %308, %310 : vector<8x128xf32>
    %312 = arith.addf %311, %2 : vector<8x128xf32>
    %313 = vector.extract_strided_slice %312 {offsets = [0, 0], sizes = [8, 32], strides = [1, 1]} : vector<8x128xf32> to vector<8x32xf32>
    %314 = arith.negf %313 : vector<8x32xf32>
    %315 = math.exp %314 : vector<8x32xf32>
    %cst_74 = arith.constant 1.000000e+00 : f32
    %316 = vector.broadcast %cst_74 : f32 to vector<8x32xf32>
    %317 = arith.addf %316, %315 : vector<8x32xf32>
    %318 = arith.divf %316, %317 : vector<8x32xf32>
    %319 = vector.extract_strided_slice %312 {offsets = [0, 32], sizes = [8, 32], strides = [1, 1]} : vector<8x128xf32> to vector<8x32xf32>
    %320 = arith.negf %319 : vector<8x32xf32>
    %321 = math.exp %320 : vector<8x32xf32>
    %cst_75 = arith.constant 1.000000e+00 : f32
    %322 = vector.broadcast %cst_75 : f32 to vector<8x32xf32>
    %323 = arith.addf %322, %321 : vector<8x32xf32>
    %324 = arith.divf %322, %323 : vector<8x32xf32>
    %325 = vector.extract_strided_slice %312 {offsets = [0, 64], sizes = [8, 32], strides = [1, 1]} : vector<8x128xf32> to vector<8x32xf32>
    %326 = math.tanh %325 : vector<8x32xf32>
    %327 = vector.extract_strided_slice %312 {offsets = [0, 96], sizes = [8, 32], strides = [1, 1]} : vector<8x128xf32> to vector<8x32xf32>
    %328 = arith.negf %327 : vector<8x32xf32>
    %329 = math.exp %328 : vector<8x32xf32>
    %cst_76 = arith.constant 1.000000e+00 : f32
    %330 = vector.broadcast %cst_76 : f32 to vector<8x32xf32>
    %331 = arith.addf %330, %329 : vector<8x32xf32>
    %332 = arith.divf %330, %331 : vector<8x32xf32>
    %333 = arith.mulf %324, %276 : vector<8x32xf32>
    %334 = arith.mulf %318, %326 : vector<8x32xf32>
    %335 = arith.addf %333, %334 : vector<8x32xf32>
    %336 = math.tanh %335 : vector<8x32xf32>
    %337 = arith.mulf %332, %336 : vector<8x32xf32>
    %338 = tpu.concatenate %337, %307 in 1 : vector<8x32xf32>, vector<8x32xf32> -> vector<8x64xf32>
    %c0_77 = arith.constant 0 : index
    %c0_78 = arith.constant 0 : index
    %339 = vector.load %arg5[%c0_77, %c0_78] : memref<64x128xf32, #tpu.memory_space<vmem>>, vector<64x128xf32>
    %cst_79 = arith.constant dense<0.000000e+00> : vector<8x128xf32>
    %340 = tpu.matmul %338, %339, %cst_79 {dimension_numbers = #tpu.dot_dimension_numbers<[1], [0], [0], [1], [0, 0, 1, 1], [], []>} : vector<8x64xf32>, vector<64x128xf32>, vector<8x128xf32> -> vector<8x128xf32>
    %341 = arith.addf %340, %5 : vector<8x128xf32>
    %342 = vector.extract_strided_slice %341 {offsets = [0, 0], sizes = [8, 32], strides = [1, 1]} : vector<8x128xf32> to vector<8x32xf32>
    %343 = arith.negf %342 : vector<8x32xf32>
    %344 = math.exp %343 : vector<8x32xf32>
    %cst_80 = arith.constant 1.000000e+00 : f32
    %345 = vector.broadcast %cst_80 : f32 to vector<8x32xf32>
    %346 = arith.addf %345, %344 : vector<8x32xf32>
    %347 = arith.divf %345, %346 : vector<8x32xf32>
    %348 = vector.extract_strided_slice %341 {offsets = [0, 32], sizes = [8, 32], strides = [1, 1]} : vector<8x128xf32> to vector<8x32xf32>
    %349 = arith.negf %348 : vector<8x32xf32>
    %350 = math.exp %349 : vector<8x32xf32>
    %cst_81 = arith.constant 1.000000e+00 : f32
    %351 = vector.broadcast %cst_81 : f32 to vector<8x32xf32>
    %352 = arith.addf %351, %350 : vector<8x32xf32>
    %353 = arith.divf %351, %352 : vector<8x32xf32>
    %354 = vector.extract_strided_slice %341 {offsets = [0, 64], sizes = [8, 32], strides = [1, 1]} : vector<8x128xf32> to vector<8x32xf32>
    %355 = math.tanh %354 : vector<8x32xf32>
    %356 = vector.extract_strided_slice %341 {offsets = [0, 96], sizes = [8, 32], strides = [1, 1]} : vector<8x128xf32> to vector<8x32xf32>
    %357 = arith.negf %356 : vector<8x32xf32>
    %358 = math.exp %357 : vector<8x32xf32>
    %cst_82 = arith.constant 1.000000e+00 : f32
    %359 = vector.broadcast %cst_82 : f32 to vector<8x32xf32>
    %360 = arith.addf %359, %358 : vector<8x32xf32>
    %361 = arith.divf %359, %360 : vector<8x32xf32>
    %362 = arith.mulf %353, %305 : vector<8x32xf32>
    %363 = arith.mulf %347, %355 : vector<8x32xf32>
    %364 = arith.addf %362, %363 : vector<8x32xf32>
    %365 = math.tanh %364 : vector<8x32xf32>
    %366 = arith.mulf %361, %365 : vector<8x32xf32>
    %367 = vector.extract_strided_slice %8 {offsets = [48, 0], sizes = [8, 128], strides = [1, 1]} : vector<64x128xf32> to vector<8x128xf32>
    %c0_83 = arith.constant 0 : index
    %c0_84 = arith.constant 0 : index
    %368 = vector.load %arg3[%c0_83, %c0_84] : memref<32x128xf32, #tpu.memory_space<vmem>>, vector<32x128xf32>
    %cst_85 = arith.constant dense<0.000000e+00> : vector<8x128xf32>
    %369 = tpu.matmul %337, %368, %cst_85 {dimension_numbers = #tpu.dot_dimension_numbers<[1], [0], [0], [1], [0, 0, 1, 1], [], []>} : vector<8x32xf32>, vector<32x128xf32>, vector<8x128xf32> -> vector<8x128xf32>
    %370 = arith.addf %367, %369 : vector<8x128xf32>
    %371 = arith.addf %370, %2 : vector<8x128xf32>
    %372 = vector.extract_strided_slice %371 {offsets = [0, 0], sizes = [8, 32], strides = [1, 1]} : vector<8x128xf32> to vector<8x32xf32>
    %373 = arith.negf %372 : vector<8x32xf32>
    %374 = math.exp %373 : vector<8x32xf32>
    %cst_86 = arith.constant 1.000000e+00 : f32
    %375 = vector.broadcast %cst_86 : f32 to vector<8x32xf32>
    %376 = arith.addf %375, %374 : vector<8x32xf32>
    %377 = arith.divf %375, %376 : vector<8x32xf32>
    %378 = vector.extract_strided_slice %371 {offsets = [0, 32], sizes = [8, 32], strides = [1, 1]} : vector<8x128xf32> to vector<8x32xf32>
    %379 = arith.negf %378 : vector<8x32xf32>
    %380 = math.exp %379 : vector<8x32xf32>
    %cst_87 = arith.constant 1.000000e+00 : f32
    %381 = vector.broadcast %cst_87 : f32 to vector<8x32xf32>
    %382 = arith.addf %381, %380 : vector<8x32xf32>
    %383 = arith.divf %381, %382 : vector<8x32xf32>
    %384 = vector.extract_strided_slice %371 {offsets = [0, 64], sizes = [8, 32], strides = [1, 1]} : vector<8x128xf32> to vector<8x32xf32>
    %385 = math.tanh %384 : vector<8x32xf32>
    %386 = vector.extract_strided_slice %371 {offsets = [0, 96], sizes = [8, 32], strides = [1, 1]} : vector<8x128xf32> to vector<8x32xf32>
    %387 = arith.negf %386 : vector<8x32xf32>
    %388 = math.exp %387 : vector<8x32xf32>
    %cst_88 = arith.constant 1.000000e+00 : f32
    %389 = vector.broadcast %cst_88 : f32 to vector<8x32xf32>
    %390 = arith.addf %389, %388 : vector<8x32xf32>
    %391 = arith.divf %389, %390 : vector<8x32xf32>
    %392 = arith.mulf %383, %335 : vector<8x32xf32>
    %393 = arith.mulf %377, %385 : vector<8x32xf32>
    %394 = arith.addf %392, %393 : vector<8x32xf32>
    %395 = math.tanh %394 : vector<8x32xf32>
    %396 = arith.mulf %391, %395 : vector<8x32xf32>
    %397 = tpu.concatenate %396, %366 in 1 : vector<8x32xf32>, vector<8x32xf32> -> vector<8x64xf32>
    %c0_89 = arith.constant 0 : index
    %c0_90 = arith.constant 0 : index
    %398 = vector.load %arg5[%c0_89, %c0_90] : memref<64x128xf32, #tpu.memory_space<vmem>>, vector<64x128xf32>
    %cst_91 = arith.constant dense<0.000000e+00> : vector<8x128xf32>
    %399 = tpu.matmul %397, %398, %cst_91 {dimension_numbers = #tpu.dot_dimension_numbers<[1], [0], [0], [1], [0, 0, 1, 1], [], []>} : vector<8x64xf32>, vector<64x128xf32>, vector<8x128xf32> -> vector<8x128xf32>
    %400 = arith.addf %399, %5 : vector<8x128xf32>
    %401 = vector.extract_strided_slice %400 {offsets = [0, 0], sizes = [8, 32], strides = [1, 1]} : vector<8x128xf32> to vector<8x32xf32>
    %402 = arith.negf %401 : vector<8x32xf32>
    %403 = math.exp %402 : vector<8x32xf32>
    %cst_92 = arith.constant 1.000000e+00 : f32
    %404 = vector.broadcast %cst_92 : f32 to vector<8x32xf32>
    %405 = arith.addf %404, %403 : vector<8x32xf32>
    %406 = arith.divf %404, %405 : vector<8x32xf32>
    %407 = vector.extract_strided_slice %400 {offsets = [0, 32], sizes = [8, 32], strides = [1, 1]} : vector<8x128xf32> to vector<8x32xf32>
    %408 = arith.negf %407 : vector<8x32xf32>
    %409 = math.exp %408 : vector<8x32xf32>
    %cst_93 = arith.constant 1.000000e+00 : f32
    %410 = vector.broadcast %cst_93 : f32 to vector<8x32xf32>
    %411 = arith.addf %410, %409 : vector<8x32xf32>
    %412 = arith.divf %410, %411 : vector<8x32xf32>
    %413 = vector.extract_strided_slice %400 {offsets = [0, 64], sizes = [8, 32], strides = [1, 1]} : vector<8x128xf32> to vector<8x32xf32>
    %414 = math.tanh %413 : vector<8x32xf32>
    %415 = vector.extract_strided_slice %400 {offsets = [0, 96], sizes = [8, 32], strides = [1, 1]} : vector<8x128xf32> to vector<8x32xf32>
    %416 = arith.negf %415 : vector<8x32xf32>
    %417 = math.exp %416 : vector<8x32xf32>
    %cst_94 = arith.constant 1.000000e+00 : f32
    %418 = vector.broadcast %cst_94 : f32 to vector<8x32xf32>
    %419 = arith.addf %418, %417 : vector<8x32xf32>
    %420 = arith.divf %418, %419 : vector<8x32xf32>
    %421 = arith.mulf %412, %364 : vector<8x32xf32>
    %422 = arith.mulf %406, %414 : vector<8x32xf32>
    %423 = arith.addf %421, %422 : vector<8x32xf32>
    %424 = math.tanh %423 : vector<8x32xf32>
    %425 = arith.mulf %420, %424 : vector<8x32xf32>
    %426 = vector.extract_strided_slice %8 {offsets = [56, 0], sizes = [8, 128], strides = [1, 1]} : vector<64x128xf32> to vector<8x128xf32>
    %c0_95 = arith.constant 0 : index
    %c0_96 = arith.constant 0 : index
    %427 = vector.load %arg3[%c0_95, %c0_96] : memref<32x128xf32, #tpu.memory_space<vmem>>, vector<32x128xf32>
    %cst_97 = arith.constant dense<0.000000e+00> : vector<8x128xf32>
    %428 = tpu.matmul %396, %427, %cst_97 {dimension_numbers = #tpu.dot_dimension_numbers<[1], [0], [0], [1], [0, 0, 1, 1], [], []>} : vector<8x32xf32>, vector<32x128xf32>, vector<8x128xf32> -> vector<8x128xf32>
    %429 = arith.addf %426, %428 : vector<8x128xf32>
    %430 = arith.addf %429, %2 : vector<8x128xf32>
    %431 = vector.extract_strided_slice %430 {offsets = [0, 0], sizes = [8, 32], strides = [1, 1]} : vector<8x128xf32> to vector<8x32xf32>
    %432 = arith.negf %431 : vector<8x32xf32>
    %433 = math.exp %432 : vector<8x32xf32>
    %cst_98 = arith.constant 1.000000e+00 : f32
    %434 = vector.broadcast %cst_98 : f32 to vector<8x32xf32>
    %435 = arith.addf %434, %433 : vector<8x32xf32>
    %436 = arith.divf %434, %435 : vector<8x32xf32>
    %437 = vector.extract_strided_slice %430 {offsets = [0, 32], sizes = [8, 32], strides = [1, 1]} : vector<8x128xf32> to vector<8x32xf32>
    %438 = arith.negf %437 : vector<8x32xf32>
    %439 = math.exp %438 : vector<8x32xf32>
    %cst_99 = arith.constant 1.000000e+00 : f32
    %440 = vector.broadcast %cst_99 : f32 to vector<8x32xf32>
    %441 = arith.addf %440, %439 : vector<8x32xf32>
    %442 = arith.divf %440, %441 : vector<8x32xf32>
    %443 = vector.extract_strided_slice %430 {offsets = [0, 64], sizes = [8, 32], strides = [1, 1]} : vector<8x128xf32> to vector<8x32xf32>
    %444 = math.tanh %443 : vector<8x32xf32>
    %445 = vector.extract_strided_slice %430 {offsets = [0, 96], sizes = [8, 32], strides = [1, 1]} : vector<8x128xf32> to vector<8x32xf32>
    %446 = arith.negf %445 : vector<8x32xf32>
    %447 = math.exp %446 : vector<8x32xf32>
    %cst_100 = arith.constant 1.000000e+00 : f32
    %448 = vector.broadcast %cst_100 : f32 to vector<8x32xf32>
    %449 = arith.addf %448, %447 : vector<8x32xf32>
    %450 = arith.divf %448, %449 : vector<8x32xf32>
    %451 = arith.mulf %442, %394 : vector<8x32xf32>
    %452 = arith.mulf %436, %444 : vector<8x32xf32>
    %453 = arith.addf %451, %452 : vector<8x32xf32>
    %454 = math.tanh %453 : vector<8x32xf32>
    %455 = arith.mulf %450, %454 : vector<8x32xf32>
    %456 = tpu.concatenate %455, %425 in 1 : vector<8x32xf32>, vector<8x32xf32> -> vector<8x64xf32>
    %c0_101 = arith.constant 0 : index
    %c0_102 = arith.constant 0 : index
    %457 = vector.load %arg5[%c0_101, %c0_102] : memref<64x128xf32, #tpu.memory_space<vmem>>, vector<64x128xf32>
    %cst_103 = arith.constant dense<0.000000e+00> : vector<8x128xf32>
    %458 = tpu.matmul %456, %457, %cst_103 {dimension_numbers = #tpu.dot_dimension_numbers<[1], [0], [0], [1], [0, 0, 1, 1], [], []>} : vector<8x64xf32>, vector<64x128xf32>, vector<8x128xf32> -> vector<8x128xf32>
    %459 = arith.addf %458, %5 : vector<8x128xf32>
    %460 = vector.extract_strided_slice %459 {offsets = [0, 0], sizes = [8, 32], strides = [1, 1]} : vector<8x128xf32> to vector<8x32xf32>
    %461 = arith.negf %460 : vector<8x32xf32>
    %462 = math.exp %461 : vector<8x32xf32>
    %cst_104 = arith.constant 1.000000e+00 : f32
    %463 = vector.broadcast %cst_104 : f32 to vector<8x32xf32>
    %464 = arith.addf %463, %462 : vector<8x32xf32>
    %465 = arith.divf %463, %464 : vector<8x32xf32>
    %466 = vector.extract_strided_slice %459 {offsets = [0, 32], sizes = [8, 32], strides = [1, 1]} : vector<8x128xf32> to vector<8x32xf32>
    %467 = arith.negf %466 : vector<8x32xf32>
    %468 = math.exp %467 : vector<8x32xf32>
    %cst_105 = arith.constant 1.000000e+00 : f32
    %469 = vector.broadcast %cst_105 : f32 to vector<8x32xf32>
    %470 = arith.addf %469, %468 : vector<8x32xf32>
    %471 = arith.divf %469, %470 : vector<8x32xf32>
    %472 = vector.extract_strided_slice %459 {offsets = [0, 64], sizes = [8, 32], strides = [1, 1]} : vector<8x128xf32> to vector<8x32xf32>
    %473 = math.tanh %472 : vector<8x32xf32>
    %474 = vector.extract_strided_slice %459 {offsets = [0, 96], sizes = [8, 32], strides = [1, 1]} : vector<8x128xf32> to vector<8x32xf32>
    %475 = arith.negf %474 : vector<8x32xf32>
    %476 = math.exp %475 : vector<8x32xf32>
    %cst_106 = arith.constant 1.000000e+00 : f32
    %477 = vector.broadcast %cst_106 : f32 to vector<8x32xf32>
    %478 = arith.addf %477, %476 : vector<8x32xf32>
    %479 = arith.divf %477, %478 : vector<8x32xf32>
    %480 = arith.mulf %471, %423 : vector<8x32xf32>
    %481 = arith.mulf %465, %473 : vector<8x32xf32>
    %482 = arith.addf %480, %481 : vector<8x32xf32>
    %483 = math.tanh %482 : vector<8x32xf32>
    %484 = arith.mulf %479, %483 : vector<8x32xf32>
    %485 = tpu.concatenate %71, %130, %189, %248, %307, %366, %425, %484 in 1 : vector<8x32xf32>, vector<8x32xf32>, vector<8x32xf32>, vector<8x32xf32>, vector<8x32xf32>, vector<8x32xf32>, vector<8x32xf32>, vector<8x32xf32> -> vector<8x256xf32>
    %c0_107 = arith.constant 0 : index
    %c0_108 = arith.constant 0 : index
    %486 = vector.load %arg7[%c0_107, %c0_108] : memref<256x128xf32, #tpu.memory_space<vmem>>, vector<256x128xf32>
    %cst_109 = arith.constant dense<0.000000e+00> : vector<8x128xf32>
    %487 = tpu.matmul %485, %486, %cst_109 {dimension_numbers = #tpu.dot_dimension_numbers<[1], [0], [0], [1], [0, 0, 1, 1], [], []>} : vector<8x256xf32>, vector<256x128xf32>, vector<8x128xf32> -> vector<8x128xf32>
    %c0_110 = arith.constant 0 : index
    %c0_111 = arith.constant 0 : index
    %488 = vector.load %arg8[%c0_110, %c0_111] : memref<1x128xf32, #tpu.memory_space<vmem>>, vector<1x128xf32>
    %489 = vector.broadcast %488 : vector<1x128xf32> to vector<8x128xf32>
    %490 = arith.addf %487, %489 : vector<8x128xf32>
    %c0_112 = arith.constant 0 : index
    %c0_113 = arith.constant 0 : index
    %491 = vector.load %arg9[%c0_112, %c0_113] : memref<8x128xf32, #tpu.memory_space<vmem>>, vector<8x128xf32>
    tpu.vector_store %arg9[%c0_112, %c0_113], %490 {strides = array<i32>} : memref<8x128xf32, #tpu.memory_space<vmem>>, vector<8x128xf32>,
    return
  }
  func.func @transform_0(%arg0: i32) -> (i32, i32) {
    %c0_i32 = arith.constant 0 : i32
    %c0_i32_0 = arith.constant 0 : i32
    %c0_i32_1 = arith.constant 0 : i32
    return %c0_i32, %c0_i32_0 : i32, i32
  }
  func.func @transform_1(%arg0: i32) -> (i32, i32) {
    %c0_i32 = arith.constant 0 : i32
    %c0_i32_0 = arith.constant 0 : i32
    %c0_i32_1 = arith.constant 0 : i32
    return %c0_i32, %c0_i32_0 : i32, i32
  }
  func.func @transform_2(%arg0: i32) -> (i32, i32) {
    %c0_i32 = arith.constant 0 : i32
    %c0_i32_0 = arith.constant 0 : i32
    %c0_i32_1 = arith.constant 0 : i32
    return %c0_i32, %c0_i32_0 : i32, i32
  }
  func.func @transform_3(%arg0: i32) -> (i32, i32) {
    %c0_i32 = arith.constant 0 : i32
    %c0_i32_0 = arith.constant 0 : i32
    %c0_i32_1 = arith.constant 0 : i32
    return %c0_i32, %c0_i32_0 : i32, i32
  }
  func.func @transform_4(%arg0: i32) -> (i32, i32) {
    %c0_i32 = arith.constant 0 : i32
    %c0_i32_0 = arith.constant 0 : i32
    %c0_i32_1 = arith.constant 0 : i32
    return %c0_i32, %c0_i32_0 : i32, i32
  }
  func.func @transform_5(%arg0: i32) -> (i32, i32) {
    %c0_i32 = arith.constant 0 : i32
    %c0_i32_0 = arith.constant 0 : i32
    %c0_i32_1 = arith.constant 0 : i32
    return %c0_i32, %c0_i32_0 : i32, i32
  }
  func.func @transform_6(%arg0: i32) -> (i32, i32) {
    %c0_i32 = arith.constant 0 : i32
    %c0_i32_0 = arith.constant 0 : i32
    %c0_i32_1 = arith.constant 0 : i32
    return %c0_i32, %c0_i32_0 : i32, i32
  }
  func.func @transform_7(%arg0: i32) -> (i32, i32) {
    %c0_i32 = arith.constant 0 : i32
    %c0_i32_0 = arith.constant 0 : i32
    %c0_i32_1 = arith.constant 0 : i32
    return %c0_i32, %c0_i32_0 : i32, i32
  }
  func.func @transform_8(%arg0: i32) -> (i32, i32) {
    %c0_i32 = arith.constant 0 : i32
    %c0_i32_0 = arith.constant 0 : i32
    %c0_i32_1 = arith.constant 0 : i32
    return %c0_i32, %c0_i32_0 : i32, i32
  }
}

</mosaic_0001>

<llo_original>
// kernel: tpu_custom_call.1
$region0: #{tpu_custom_call.1}
  #allocation0 [shape = 'u32[]', space=smem, size = 0x4, offset = 0x4, fixed_abs, tag = 'smem constant byte address 0x4 - core index']
  #allocation1 [shape = 'u32[144,128]{1,0:T(1,128)}', space=vmem, size = 0x12000, scoped, tag = 'internal scratch']
  %s0 = inlined_call_operand.vmem [shape: f32[64,16], index: 0, kind: input, shape index: {}]
  %s1 = inlined_call_operand.vmem [shape: f32[16,128], index: 1, kind: input, shape index: {}]
  %s2 = inlined_call_operand.hbm [shape: f32[32,128], index: 2, kind: input, shape index: {}]
  %s3 = inlined_call_operand.vmem [shape: f32[1,128], index: 3, kind: input, shape index: {}]
  %s4 = inlined_call_operand.vmem [shape: f32[64,128], index: 4, kind: input, shape index: {}]
  %s5 = inlined_call_operand.vmem [shape: f32[1,128], index: 5, kind: input, shape index: {}]
  %s6 = inlined_call_operand.hbm [shape: f32[256,128], index: 6, kind: input, shape index: {}]
  %s7 = inlined_call_operand.vmem [shape: f32[1,128], index: 7, kind: input, shape index: {}]
  %s8 = inlined_call_operand.hbm [shape: f32[8,128], index: 8, kind: output, shape index: {}]
  %s9 = sld [smem:[#allocation0]]
  $region50: #{tpu_custom_call.1} parent=0
    _
  %s11 = ssub.s32 1, %s9
  %s12 = scalar_select 0, %s11, %s9
  $region1: #{tpu_custom_call.1} parent=0
    #allocation2 [shape = 'u8[16384]{0}', space=vmem, size = 0x4000, scoped, tag = 'input window, operand 2, single buffered']
    #allocation3 [shape = 's32[1]{0}', space=sflag, size = 0x4, scoped, tag = 'scoped memory for tpu_custom_call.1']
    #allocation4 [shape = 's32[1]{0}', space=sflag, size = 0x4, scoped, tag = 'scoped memory for tpu_custom_call.1']
    #allocation5 [shape = 'u8[131072]{0}', space=vmem, size = 0x20000, scoped, tag = 'input window, operand 6, single buffered']
    #allocation6 [shape = 's32[1]{0}', space=sflag, size = 0x4, scoped, tag = 'scoped memory for tpu_custom_call.1']
    #allocation7 [shape = 'u8[4096]{0}', space=vmem, size = 0x1000, scoped, tag = 'output window, operand 0, single buffered']
    %13 = vsyncpa [#allocation3], 0
    %14 = vsyncpa [#allocation6], 0
    %15 = vsyncpa [#allocation4], 0
    // Predicated region
    $region2: #{tpu_custom_call.1} parent=1 // pred_check
      _
    $region3: #{tpu_custom_call.1} parent=1 // pred_check_branch
      %17 = sbr.rel (0) target = $region5
    $region4: #{tpu_custom_call.1} parent=1 // pred_region
      _
    $region5: #{tpu_custom_call.1} parent=1 // pred_fallthru
      _
    // Predicated region
    $region6: #{tpu_custom_call.1} parent=1 // pred_check
      _
    $region7: #{tpu_custom_call.1} parent=1 // pred_check_branch
      %19 = sbr.rel (0) target = $region9
    $region8: #{tpu_custom_call.1} parent=1 // pred_region
      _
    $region9: #{tpu_custom_call.1} parent=1 // pred_fallthru
      _
    // Predicated region
    $region10: #{tpu_custom_call.1} parent=1 // pred_check
      _
    $region11: #{tpu_custom_call.1} parent=1 // pred_check_branch
      %21 = sbr.rel (0) target = $region13
    $region12: #{tpu_custom_call.1} parent=1 // pred_region
      %s23 = ssub.s32 512, 512
      %24 = vsyncadd [#allocation3], %s23
      %s25 = sshll.u32 [#allocation2], 4
      %s26 = int_to_ptr.vmem [resolvable:$true] %s25
      %31 = dma.hbm_to_vmem [thread:$0]  %s2, 512, %s26, [#allocation3], 128, 128, 8
    $region13: #{tpu_custom_call.1} parent=1 // pred_fallthru
      _
    // Predicated region
    $region14: #{tpu_custom_call.1} parent=1 // pred_check
      _
    $region15: #{tpu_custom_call.1} parent=1 // pred_check_branch
      %33 = sbr.rel (0) target = $region17
    $region16: #{tpu_custom_call.1} parent=1 // pred_region
      _
    $region17: #{tpu_custom_call.1} parent=1 // pred_fallthru
      _
    // Predicated region
    $region18: #{tpu_custom_call.1} parent=1 // pred_check
      _
    $region19: #{tpu_custom_call.1} parent=1 // pred_check_branch
      %35 = sbr.rel (0) target = $region21
    $region20: #{tpu_custom_call.1} parent=1 // pred_region
      _
    $region21: #{tpu_custom_call.1} parent=1 // pred_fallthru
      _
    // Predicated region
    $region22: #{tpu_custom_call.1} parent=1 // pred_check
      _
    $region23: #{tpu_custom_call.1} parent=1 // pred_check_branch
      %37 = sbr.rel (0) target = $region25
    $region24: #{tpu_custom_call.1} parent=1 // pred_region
      _
    $region25: #{tpu_custom_call.1} parent=1 // pred_fallthru
      _
    // Predicated region
    $region26: #{tpu_custom_call.1} parent=1 // pred_check
      _
    $region27: #{tpu_custom_call.1} parent=1 // pred_check_branch
      %39 = sbr.rel (0) target = $region29
    $region28: #{tpu_custom_call.1} parent=1 // pred_region
      %s41 = ssub.s32 4096, 4096
      %42 = vsyncadd [#allocation6], %s41
      %s43 = sshll.u32 [#allocation5], 4
      %s44 = int_to_ptr.vmem [resolvable:$true] %s43
      %49 = dma.hbm_to_vmem [thread:$0]  %s6, 4096, %s44, [#allocation6], 128, 128, 8
    $region29: #{tpu_custom_call.1} parent=1 // pred_fallthru
      _
    // Predicated region
    $region30: #{tpu_custom_call.1} parent=1 // pred_check
      _
    $region31: #{tpu_custom_call.1} parent=1 // pred_check_branch
      %51 = sbr.rel (0) target = $region33
    $region32: #{tpu_custom_call.1} parent=1 // pred_region
      _
    $region33: #{tpu_custom_call.1} parent=1 // pred_fallthru
      _
    // Predicated region
    $region34: #{tpu_custom_call.1} parent=1 // pred_check
      _
    $region35: #{tpu_custom_call.1} parent=1 // pred_check_branch
      %53 = sbr.rel (0) target = $region37
    $region36: #{tpu_custom_call.1} parent=1 // pred_region
      %54 = dma.done [#allocation3], 512
    $region37: #{tpu_custom_call.1} parent=1 // pred_fallthru
      _
    // Predicated region
    $region38: #{tpu_custom_call.1} parent=1 // pred_check
      _
    $region39: #{tpu_custom_call.1} parent=1 // pred_check_branch
      %56 = sbr.rel (0) target = $region41
    $region40: #{tpu_custom_call.1} parent=1 // pred_region
      %57 = dma.done [#allocation6], 4096
    $region41: #{tpu_custom_call.1} parent=1 // pred_fallthru
      _
    %v58 = vld [vmem:[%s3] sm:$0x1]
    %v60 = vlaneseq
    %v61 = vshrl.u32 %v60, 7
    %v62 = vsub.s32 0, %v61
    %v63 = vrot.slane %v58, %v62
    %v65 = vld [vmem:[%s5] sm:$0x1]
    %v67 = vlaneseq
    %v68 = vshrl.u32 %v67, 7
    %v69 = vsub.s32 0, %v68
    %v70 = vrot.slane %v65, %v69
    %v72 = vld [vmem:[%s0] sm:$0xff]
    %v73 = vld [vmem:[%s0 + $0x8] sm:$0xff]
    %v74 = vld [vmem:[%s0 + $0x10] sm:$0xff]
    %v75 = vld [vmem:[%s0 + $0x18] sm:$0xff]
    %v76 = vld [vmem:[%s0 + $0x20] sm:$0xff]
    %v77 = vld [vmem:[%s0 + $0x28] sm:$0xff]
    %v78 = vld [vmem:[%s0 + $0x30] sm:$0xff]
    %v79 = vld [vmem:[%s0 + $0x38] sm:$0xff]
    %v80 = vld [vmem:[%s1] sm:$0xff]
    %v81 = vld [vmem:[%s1 + $0x8] sm:$0xff]
    %vm82 = vcmask 130048
    %v84 = vsel %vm82, %v72, 0
    %v87 = vsel %vm82, %v73, 0
    %v90 = vsel %vm82, %v74, 0
    %v93 = vsel %vm82, %v75, 0
    %v96 = vsel %vm82, %v76, 0
    %v99 = vsel %vm82, %v77, 0
    %v102 = vsel %vm82, %v78, 0
    %v105 = vsel %vm82, %v79, 0
    %107 = vmatprep.subr.mxu0 0.0
    %108 = vmatpush1.msra.mxu0 %v80
    %109 = vmatprep.subr.mxu0 0.0
    %110 = vmatpush1.msra.mxu0 %v81
    %111 = vmatprep.subr.mxu0 0.0
    %112 = vmatpush1.msra.mxu0 0.0
    %113 = vmatprep.subr.mxu0 0.0
    %114 = vmatpush1.msra.mxu0 0.0
    %115 = vmatprep.subr.mxu0 0.0
    %116 = vmatpush1.msra.mxu0 0.0
    %117 = vmatprep.subr.mxu0 0.0
    %118 = vmatpush1.msra.mxu0 0.0
    %119 = vmatprep.subr.mxu0 0.0
    %120 = vmatpush1.msra.mxu0 0.0
    %121 = vmatprep.subr.mxu0 0.0
    %122 = vmatpush1.msra.mxu0 0.0
    %123 = vmatprep.subr.mxu0 0.0
    %124 = vmatpush1.msra.mxu0 0.0
    %125 = vmatprep.subr.mxu0 0.0
    %126 = vmatpush1.msra.mxu0 0.0
    %127 = vmatprep.subr.mxu0 0.0
    %128 = vmatpush1.msra.mxu0 0.0
    %129 = vmatprep.subr.mxu0 0.0
    %130 = vmatpush1.msra.mxu0 0.0
    %131 = vmatprep.subr.mxu0 0.0
    %132 = vmatpush1.msra.mxu0 0.0
    %133 = vmatprep.subr.mxu0 0.0
    %134 = vmatpush1.msra.mxu0 0.0
    %135 = vmatprep.subr.mxu0 0.0
    %136 = vmatpush1.msra.mxu0 0.0
    %137 = vmatprep.subr.mxu0 0.0
    %138 = vmatpush1.msra.mxu0 0.0
    %139 = vmatprep.subr.mxu0 0.0
    %140 = vmatpush1.msra.mxu0 0.0
    %141 = vmatprep.subr.mxu0 0.0
    %142 = vmatpush1.msra.mxu0 0.0
    %143 = vmatprep.subr.mxu0 0.0
    %144 = vmatpush1.msra.mxu0 0.0
    %145 = vmatprep.subr.mxu0 0.0
    %146 = vmatpush1.msra.mxu0 0.0
    %147 = vmatprep.subr.mxu0 0.0
    %148 = vmatpush1.msra.mxu0 0.0
    %149 = vmatprep.subr.mxu0 0.0
    %150 = vmatpush1.msra.mxu0 0.0
    %151 = vmatprep.subr.mxu0 0.0
    %152 = vmatpush1.msra.mxu0 0.0
    %153 = vmatprep.subr.mxu0 0.0
    %154 = vmatpush1.msra.mxu0 0.0
    %155 = vmatprep.subr.mxu0 0.0
    %156 = vmatpush1.msra.mxu0 0.0
    %157 = vmatprep.subr.mxu0 0.0
    %158 = vmatpush1.msra.mxu0 0.0
    %159 = vmatprep.subr.mxu0 0.0
    %160 = vmatpush1.msra.mxu0 0.0
    %161 = vmatprep.subr.mxu0 0.0
    %162 = vmatpush1.msra.mxu0 0.0
    %163 = vmatprep.subr.mxu0 0.0
    %164 = vmatpush1.msra.mxu0 0.0
    %165 = vmatprep.subr.mxu0 0.0
    %166 = vmatpush1.msra.mxu0 0.0
    %167 = vmatprep.subr.mxu0 0.0
    %168 = vmatpush1.msra.mxu0 0.0
    %169 = vmatprep.subr.mxu0 0.0
    %170 = vmatpush1.msra.mxu0 0.0
    %171 = vmatprep.mubr.f32.mxu0 0.0
    %172 = vmatmul.mubr.f32.gmra.mrb[0].mxu0 %v84
    %v173 = vpop.f32.mrb[0].mxu0
    %v174 = vadd.f32 0.0, %v173
    %v175 = vpop.f32.mrb[0].mxu0
    %176 = vmatprep.mubr.f32.mxu0 0.0
    %177 = vmatmul.mubr.f32.gmra.mrb[0].mxu0 %v87
    %v178 = vpop.f32.mrb[0].mxu0
    %v179 = vadd.f32 0.0, %v178
    %v180 = vpop.f32.mrb[0].mxu0
    %181 = vmatprep.mubr.f32.mxu0 0.0
    %182 = vmatmul.mubr.f32.gmra.mrb[0].mxu0 %v90
    %v183 = vpop.f32.mrb[0].mxu0
    %v184 = vadd.f32 0.0, %v183
    %v185 = vpop.f32.mrb[0].mxu0
    %186 = vmatprep.mubr.f32.mxu0 0.0
    %187 = vmatmul.mubr.f32.gmra.mrb[0].mxu0 %v93
    %v188 = vpop.f32.mrb[0].mxu0
    %v189 = vadd.f32 0.0, %v188
    %v190 = vpop.f32.mrb[0].mxu0
    %191 = vmatprep.mubr.f32.mxu0 0.0
    %192 = vmatmul.mubr.f32.gmra.mrb[0].mxu0 %v96
    %v193 = vpop.f32.mrb[0].mxu0
    %v194 = vadd.f32 0.0, %v193
    %v195 = vpop.f32.mrb[0].mxu0
    %196 = vmatprep.mubr.f32.mxu0 0.0
    %197 = vmatmul.mubr.f32.gmra.mrb[0].mxu0 %v99
    %v198 = vpop.f32.mrb[0].mxu0
    %v199 = vadd.f32 0.0, %v198
    %v200 = vpop.f32.mrb[0].mxu0
    %201 = vmatprep.mubr.f32.mxu0 0.0
    %202 = vmatmul.mubr.f32.gmra.mrb[0].mxu0 %v102
    %v203 = vpop.f32.mrb[0].mxu0
    %v204 = vadd.f32 0.0, %v203
    %v205 = vpop.f32.mrb[0].mxu0
    %206 = vmatprep.mubr.f32.mxu0 0.0
    %207 = vmatmul.mubr.f32.gmra.mrb[0].mxu0 %v105
    %v208 = vpop.f32.mrb[0].mxu0
    %v209 = vadd.f32 0.0, %v208
    %v210 = vpop.f32.mrb[0].mxu0
    %211 = vdwg.mxu0
    %v212 = vld [vmem:[#allocation2] sm:$0xff]
    %v213 = vld [vmem:[#allocation2 + $0x8] sm:$0xff]
    %v214 = vld [vmem:[#allocation2 + $0x10] sm:$0xff]
    %v215 = vld [vmem:[#allocation2 + $0x18] sm:$0xff]
    %vm216 = vcmask 261120
    %v218 = vsel %vm216, 0.0, 0
    %220 = vmatprep.subr.mxu0 0.0
    %221 = vmatpush1.msra.mxu0 %v212
    %222 = vmatprep.subr.mxu0 0.0
    %223 = vmatpush1.msra.mxu0 %v213
    %224 = vmatprep.subr.mxu0 0.0
    %225 = vmatpush1.msra.mxu0 %v214
    %226 = vmatprep.subr.mxu0 0.0
    %227 = vmatpush1.msra.mxu0 %v215
    %228 = vmatprep.subr.mxu0 0.0
    %229 = vmatpush1.msra.mxu0 0.0
    %230 = vmatprep.subr.mxu0 0.0
    %231 = vmatpush1.msra.mxu0 0.0
    %232 = vmatprep.subr.mxu0 0.0
    %233 = vmatpush1.msra.mxu0 0.0
    %234 = vmatprep.subr.mxu0 0.0
    %235 = vmatpush1.msra.mxu0 0.0
    %236 = vmatprep.subr.mxu0 0.0
    %237 = vmatpush1.msra.mxu0 0.0
    %238 = vmatprep.subr.mxu0 0.0
    %239 = vmatpush1.msra.mxu0 0.0
    %240 = vmatprep.subr.mxu0 0.0
    %241 = vmatpush1.msra.mxu0 0.0
    %242 = vmatprep.subr.mxu0 0.0
    %243 = vmatpush1.msra.mxu0 0.0
    %244 = vmatprep.subr.mxu0 0.0
    %245 = vmatpush1.msra.mxu0 0.0
    %246 = vmatprep.subr.mxu0 0.0
    %247 = vmatpush1.msra.mxu0 0.0
    %248 = vmatprep.subr.mxu0 0.0
    %249 = vmatpush1.msra.mxu0 0.0
    %250 = vmatprep.subr.mxu0 0.0
    %251 = vmatpush1.msra.mxu0 0.0
    %252 = vmatprep.subr.mxu0 0.0
    %253 = vmatpush1.msra.mxu0 0.0
    %254 = vmatprep.subr.mxu0 0.0
    %255 = vmatpush1.msra.mxu0 0.0
    %256 = vmatprep.subr.mxu0 0.0
    %257 = vmatpush1.msra.mxu0 0.0
    %258 = vmatprep.subr.mxu0 0.0
    %259 = vmatpush1.msra.mxu0 0.0
    %260 = vmatprep.subr.mxu0 0.0
    %261 = vmatpush1.msra.mxu0 0.0
    %262 = vmatprep.subr.mxu0 0.0
    %263 = vmatpush1.msra.mxu0 0.0
    %264 = vmatprep.subr.mxu0 0.0
    %265 = vmatpush1.msra.mxu0 0.0
    %266 = vmatprep.subr.mxu0 0.0
    %267 = vmatpush1.msra.mxu0 0.0
    %268 = vmatprep.subr.mxu0 0.0
    %269 = vmatpush1.msra.mxu0 0.0
    %270 = vmatprep.subr.mxu0 0.0
    %271 = vmatpush1.msra.mxu0 0.0
    %272 = vmatprep.subr.mxu0 0.0
    %273 = vmatpush1.msra.mxu0 0.0
    %274 = vmatprep.subr.mxu0 0.0
    %275 = vmatpush1.msra.mxu0 0.0
    %276 = vmatprep.subr.mxu0 0.0
    %277 = vmatpush1.msra.mxu0 0.0
    %278 = vmatprep.subr.mxu0 0.0
    %279 = vmatpush1.msra.mxu0 0.0
    %280 = vmatprep.subr.mxu0 0.0
    %281 = vmatpush1.msra.mxu0 0.0
    %282 = vmatprep.subr.mxu0 0.0
    %283 = vmatpush1.msra.mxu0 0.0
    %284 = vmatprep.mubr.f32.mxu0 0.0
    %285 = vmatmul.mubr.f32.gmra.mrb[0].mxu0 %v218
    %v286 = vpop.f32.mrb[0].mxu0
    %v287 = vadd.f32 0.0, %v286
    %v288 = vpop.f32.mrb[0].mxu0
    %289 = vdwg.mxu0
    %v290 = vadd.f32 %v174, %v287
    %v291 = vadd.f32 %v290, %v63
    %v292 = vxor.u32 %v291, 2147483648
    %v293 = vmul.f32 %v292, 1.442695
    %v294 = vpow.pop %v293
    %v295 = vadd.f32 %v294, 1.0
    %v296 = vrcp.pop %v295
    %v297 = vmul.f32 1.0, %v296
    %v298 = vtanh.pop %v291
    %v299 = vmul.f32 %v297, 0.0
    %301 = vrot.lane.b32.xlu0 %v298, 64
    %v302 = vpop.permute.xlu0 %301
    %v304 = vmul.f32 %v297, %v302
    %306 = vrot.lane.b32.xlu0 %v304, 32
    %v307 = vpop.permute.xlu0 %306
    %v309 = vadd.f32 %v299, %v307
    %v310 = vtanh.pop %v309
    %312 = vrot.lane.b32.xlu0 %v310, 64
    %v313 = vpop.permute.xlu0 %312
    %v315 = vmul.f32 %v297, %v313
    %317 = vrot.lane.b32.xlu0 %v315, 32
    %v318 = vpop.permute.xlu0 %317
    %v320 = vsel %vm216, %v318, 0.0
    %v321 = vld [vmem:[%s4] sm:$0xff]
    %v322 = vld [vmem:[%s4 + $0x8] sm:$0xff]
    %v323 = vld [vmem:[%s4 + $0x10] sm:$0xff]
    %v324 = vld [vmem:[%s4 + $0x18] sm:$0xff]
    %v325 = vld [vmem:[%s4 + $0x20] sm:$0xff]
    %v326 = vld [vmem:[%s4 + $0x28] sm:$0xff]
    %v327 = vld [vmem:[%s4 + $0x30] sm:$0xff]
    %v328 = vld [vmem:[%s4 + $0x38] sm:$0xff]
    %vm329 = vcmask 523264
    %v331 = vsel %vm329, %v320, 0
    %333 = vmatprep.subr.mxu0 0.0
    %334 = vmatpush1.msra.mxu0 %v321
    %335 = vmatprep.subr.mxu0 0.0
    %336 = vmatpush1.msra.mxu0 %v322
    %337 = vmatprep.subr.mxu0 0.0
    %338 = vmatpush1.msra.mxu0 %v323
    %339 = vmatprep.subr.mxu0 0.0
    %340 = vmatpush1.msra.mxu0 %v324
    %341 = vmatprep.subr.mxu0 0.0
    %342 = vmatpush1.msra.mxu0 %v325
    %343 = vmatprep.subr.mxu0 0.0
    %344 = vmatpush1.msra.mxu0 %v326
    %345 = vmatprep.subr.mxu0 0.0
    %346 = vmatpush1.msra.mxu0 %v327
    %347 = vmatprep.subr.mxu0 0.0
    %348 = vmatpush1.msra.mxu0 %v328
    %349 = vmatprep.subr.mxu0 0.0
    %350 = vmatpush1.msra.mxu0 0.0
    %351 = vmatprep.subr.mxu0 0.0
    %352 = vmatpush1.msra.mxu0 0.0
    %353 = vmatprep.subr.mxu0 0.0
    %354 = vmatpush1.msra.mxu0 0.0
    %355 = vmatprep.subr.mxu0 0.0
    %356 = vmatpush1.msra.mxu0 0.0
    %357 = vmatprep.subr.mxu0 0.0
    %358 = vmatpush1.msra.mxu0 0.0
    %359 = vmatprep.subr.mxu0 0.0
    %360 = vmatpush1.msra.mxu0 0.0
    %361 = vmatprep.subr.mxu0 0.0
    %362 = vmatpush1.msra.mxu0 0.0
    %363 = vmatprep.subr.mxu0 0.0
    %364 = vmatpush1.msra.mxu0 0.0
    %365 = vmatprep.subr.mxu0 0.0
    %366 = vmatpush1.msra.mxu0 0.0
    %367 = vmatprep.subr.mxu0 0.0
    %368 = vmatpush1.msra.mxu0 0.0
    %369 = vmatprep.subr.mxu0 0.0
    %370 = vmatpush1.msra.mxu0 0.0
    %371 = vmatprep.subr.mxu0 0.0
    %372 = vmatpush1.msra.mxu0 0.0
    %373 = vmatprep.subr.mxu0 0.0
    %374 = vmatpush1.msra.mxu0 0.0
    %375 = vmatprep.subr.mxu0 0.0
    %376 = vmatpush1.msra.mxu0 0.0
    %377 = vmatprep.subr.mxu0 0.0
    %378 = vmatpush1.msra.mxu0 0.0
    %379 = vmatprep.subr.mxu0 0.0
    %380 = vmatpush1.msra.mxu0 0.0
    %381 = vmatprep.subr.mxu0 0.0
    %382 = vmatpush1.msra.mxu0 0.0
    %383 = vmatprep.subr.mxu0 0.0
    %384 = vmatpush1.msra.mxu0 0.0
    %385 = vmatprep.subr.mxu0 0.0
    %386 = vmatpush1.msra.mxu0 0.0
    %387 = vmatprep.subr.mxu0 0.0
    %388 = vmatpush1.msra.mxu0 0.0
    %389 = vmatprep.subr.mxu0 0.0
    %390 = vmatpush1.msra.mxu0 0.0
    %391 = vmatprep.subr.mxu0 0.0
    %392 = vmatpush1.msra.mxu0 0.0
    %393 = vmatprep.subr.mxu0 0.0
    %394 = vmatpush1.msra.mxu0 0.0
    %395 = vmatprep.subr.mxu0 0.0
    %396 = vmatpush1.msra.mxu0 0.0
    %397 = vmatprep.mubr.f32.mxu0 0.0
    %398 = vmatmul.mubr.f32.gmra.mrb[0].mxu0 %v331
    %v399 = vpop.f32.mrb[0].mxu0
    %v400 = vadd.f32 %v70, %v399
    %v401 = vpop.f32.mrb[0].mxu0
    %402 = vdwg.mxu0
    %v403 = vxor.u32 %v400, 2147483648
    %v404 = vmul.f32 %v403, 1.442695
    %v405 = vpow.pop %v404
    %v406 = vadd.f32 %v405, 1.0
    %v407 = vrcp.pop %v406
    %v408 = vmul.f32 1.0, %v407
    %v409 = vtanh.pop %v400
    %v410 = vmul.f32 %v408, 0.0
    %412 = vrot.lane.b32.xlu0 %v409, 64
    %v413 = vpop.permute.xlu0 %412
    %v415 = vmul.f32 %v408, %v413
    %417 = vrot.lane.b32.xlu0 %v415, 32
    %v418 = vpop.permute.xlu0 %417
    %v420 = vadd.f32 %v410, %v418
    %v421 = vtanh.pop %v420
    %423 = vrot.lane.b32.xlu0 %v421, 64
    %v424 = vpop.permute.xlu0 %423
    %v426 = vmul.f32 %v408, %v424
    %v427 = vsel %vm216, %v318, 0
    %429 = vmatprep.subr.mxu0 0.0
    %430 = vmatpush1.msra.mxu0 %v212
    %431 = vmatprep.subr.mxu0 0.0
    %432 = vmatpush1.msra.mxu0 %v213
    %433 = vmatprep.subr.mxu0 0.0
    %434 = vmatpush1.msra.mxu0 %v214
    %435 = vmatprep.subr.mxu0 0.0
    %436 = vmatpush1.msra.mxu0 %v215
    %437 = vmatprep.subr.mxu0 0.0
    %438 = vmatpush1.msra.mxu0 0.0
    %439 = vmatprep.subr.mxu0 0.0
    %440 = vmatpush1.msra.mxu0 0.0
    %441 = vmatprep.subr.mxu0 0.0
    %442 = vmatpush1.msra.mxu0 0.0
    %443 = vmatprep.subr.mxu0 0.0
    %444 = vmatpush1.msra.mxu0 0.0
    %445 = vmatprep.subr.mxu0 0.0
    %446 = vmatpush1.msra.mxu0 0.0
    %447 = vmatprep.subr.mxu0 0.0
    %448 = vmatpush1.msra.mxu0 0.0
    %449 = vmatprep.subr.mxu0 0.0
    %450 = vmatpush1.msra.mxu0 0.0
    %451 = vmatprep.subr.mxu0 0.0
    %452 = vmatpush1.msra.mxu0 0.0
    %453 = vmatprep.subr.mxu0 0.0
    %454 = vmatpush1.msra.mxu0 0.0
    %455 = vmatprep.subr.mxu0 0.0
    %456 = vmatpush1.msra.mxu0 0.0
    %457 = vmatprep.subr.mxu0 0.0
    %458 = vmatpush1.msra.mxu0 0.0
    %459 = vmatprep.subr.mxu0 0.0
    %460 = vmatpush1.msra.mxu0 0.0
    %461 = vmatprep.subr.mxu0 0.0
    %462 = vmatpush1.msra.mxu0 0.0
    %463 = vmatprep.subr.mxu0 0.0
    %464 = vmatpush1.msra.mxu0 0.0
    %465 = vmatprep.subr.mxu0 0.0
    %466 = vmatpush1.msra.mxu0 0.0
    %467 = vmatprep.subr.mxu0 0.0
    %468 = vmatpush1.msra.mxu0 0.0
    %469 = vmatprep.subr.mxu0 0.0
    %470 = vmatpush1.msra.mxu0 0.0
    %471 = vmatprep.subr.mxu0 0.0
    %472 = vmatpush1.msra.mxu0 0.0
    %473 = vmatprep.subr.mxu0 0.0
    %474 = vmatpush1.msra.mxu0 0.0
    %475 = vmatprep.subr.mxu0 0.0
    %476 = vmatpush1.msra.mxu0 0.0
    %477 = vmatprep.subr.mxu0 0.0
    %478 = vmatpush1.msra.mxu0 0.0
    %479 = vmatprep.subr.mxu0 0.0
    %480 = vmatpush1.msra.mxu0 0.0
    %481 = vmatprep.subr.mxu0 0.0
    %482 = vmatpush1.msra.mxu0 0.0
    %483 = vmatprep.subr.mxu0 0.0
    %484 = vmatpush1.msra.mxu0 0.0
    %485 = vmatprep.subr.mxu0 0.0
    %486 = vmatpush1.msra.mxu0 0.0
    %487 = vmatprep.subr.mxu0 0.0
    %488 = vmatpush1.msra.mxu0 0.0
    %489 = vmatprep.subr.mxu0 0.0
    %490 = vmatpush1.msra.mxu0 0.0
    %491 = vmatprep.subr.mxu0 0.0
    %492 = vmatpush1.msra.mxu0 0.0
    %493 = vmatprep.mubr.f32.mxu0 0.0
    %494 = vmatmul.mubr.f32.gmra.mrb[0].mxu0 %v427
    %v495 = vpop.f32.mrb[0].mxu0
    %v496 = vadd.f32 0.0, %v495
    %v497 = vpop.f32.mrb[0].mxu0
    %498 = vdwg.mxu0
    %v499 = vadd.f32 %v179, %v496
    %v500 = vadd.f32 %v499, %v63
    %v501 = vxor.u32 %v500, 2147483648
    %v502 = vmul.f32 %v501, 1.442695
    %v503 = vpow.pop %v502
    %v504 = vadd.f32 %v503, 1.0
    %v505 = vrcp.pop %v504
    %v506 = vmul.f32 1.0, %v505
    %v507 = vtanh.pop %v500
    %v508 = vmul.f32 %v506, %v309
    %510 = vrot.lane.b32.xlu0 %v507, 64
    %v511 = vpop.permute.xlu0 %510
    %v513 = vmul.f32 %v506, %v511
    %515 = vrot.lane.b32.xlu0 %v513, 32
    %v516 = vpop.permute.xlu0 %515
    %v518 = vadd.f32 %v508, %v516
    %v519 = vtanh.pop %v518
    %521 = vrot.lane.b32.xlu0 %v519, 64
    %v522 = vpop.permute.xlu0 %521
    %v524 = vmul.f32 %v506, %v522
    %526 = vrot.lane.b32.xlu0 %v524, 32
    %v527 = vpop.permute.xlu0 %526
    %530 = vrot.lane.b32.xlu0 %v426, 64
    %v531 = vpop.permute.xlu0 %530
    %v533 = vsel %vm216, %v527, %v531
    %v535 = vsel %vm329, %v533, 0
    %537 = vmatprep.subr.mxu0 0.0
    %538 = vmatpush1.msra.mxu0 %v321
    %539 = vmatprep.subr.mxu0 0.0
    %540 = vmatpush1.msra.mxu0 %v322
    %541 = vmatprep.subr.mxu0 0.0
    %542 = vmatpush1.msra.mxu0 %v323
    %543 = vmatprep.subr.mxu0 0.0
    %544 = vmatpush1.msra.mxu0 %v324
    %545 = vmatprep.subr.mxu0 0.0
    %546 = vmatpush1.msra.mxu0 %v325
    %547 = vmatprep.subr.mxu0 0.0
    %548 = vmatpush1.msra.mxu0 %v326
    %549 = vmatprep.subr.mxu0 0.0
    %550 = vmatpush1.msra.mxu0 %v327
    %551 = vmatprep.subr.mxu0 0.0
    %552 = vmatpush1.msra.mxu0 %v328
    %553 = vmatprep.subr.mxu0 0.0
    %554 = vmatpush1.msra.mxu0 0.0
    %555 = vmatprep.subr.mxu0 0.0
    %556 = vmatpush1.msra.mxu0 0.0
    %557 = vmatprep.subr.mxu0 0.0
    %558 = vmatpush1.msra.mxu0 0.0
    %559 = vmatprep.subr.mxu0 0.0
    %560 = vmatpush1.msra.mxu0 0.0
    %561 = vmatprep.subr.mxu0 0.0
    %562 = vmatpush1.msra.mxu0 0.0
    %563 = vmatprep.subr.mxu0 0.0
    %564 = vmatpush1.msra.mxu0 0.0
    %565 = vmatprep.subr.mxu0 0.0
    %566 = vmatpush1.msra.mxu0 0.0
    %567 = vmatprep.subr.mxu0 0.0
    %568 = vmatpush1.msra.mxu0 0.0
    %569 = vmatprep.subr.mxu0 0.0
    %570 = vmatpush1.msra.mxu0 0.0
    %571 = vmatprep.subr.mxu0 0.0
    %572 = vmatpush1.msra.mxu0 0.0
    %573 = vmatprep.subr.mxu0 0.0
    %574 = vmatpush1.msra.mxu0 0.0
    %575 = vmatprep.subr.mxu0 0.0
    %576 = vmatpush1.msra.mxu0 0.0
    %577 = vmatprep.subr.mxu0 0.0
    %578 = vmatpush1.msra.mxu0 0.0
    %579 = vmatprep.subr.mxu0 0.0
    %580 = vmatpush1.msra.mxu0 0.0
    %581 = vmatprep.subr.mxu0 0.0
    %582 = vmatpush1.msra.mxu0 0.0
    %583 = vmatprep.subr.mxu0 0.0
    %584 = vmatpush1.msra.mxu0 0.0
    %585 = vmatprep.subr.mxu0 0.0
    %586 = vmatpush1.msra.mxu0 0.0
    %587 = vmatprep.subr.mxu0 0.0
    %588 = vmatpush1.msra.mxu0 0.0
    %589 = vmatprep.subr.mxu0 0.0
    %590 = vmatpush1.msra.mxu0 0.0
    %591 = vmatprep.subr.mxu0 0.0
    %592 = vmatpush1.msra.mxu0 0.0
    %593 = vmatprep.subr.mxu0 0.0
    %594 = vmatpush1.msra.mxu0 0.0
    %595 = vmatprep.subr.mxu0 0.0
    %596 = vmatpush1.msra.mxu0 0.0
    %597 = vmatprep.subr.mxu0 0.0
    %598 = vmatpush1.msra.mxu0 0.0
    %599 = vmatprep.subr.mxu0 0.0
    %600 = vmatpush1.msra.mxu0 0.0
    %601 = vmatprep.mubr.f32.mxu0 0.0
    %602 = vmatmul.mubr.f32.gmra.mrb[0].mxu0 %v535
    %v603 = vpop.f32.mrb[0].mxu0
    %v604 = vadd.f32 %v70, %v603
    %v605 = vpop.f32.mrb[0].mxu0
    %606 = vdwg.mxu0
    %v607 = vxor.u32 %v604, 2147483648
    %v608 = vmul.f32 %v607, 1.442695
    %v609 = vpow.pop %v608
    %v610 = vadd.f32 %v609, 1.0
    %v611 = vrcp.pop %v610
    %v612 = vmul.f32 1.0, %v611
    %v613 = vtanh.pop %v604
    %v614 = vmul.f32 %v612, %v420
    %616 = vrot.lane.b32.xlu0 %v613, 64
    %v617 = vpop.permute.xlu0 %616
    %v619 = vmul.f32 %v612, %v617
    %621 = vrot.lane.b32.xlu0 %v619, 32
    %v622 = vpop.permute.xlu0 %621
    %v624 = vadd.f32 %v614, %v622
    %v625 = vtanh.pop %v624
    %627 = vrot.lane.b32.xlu0 %v625, 64
    %v628 = vpop.permute.xlu0 %627
    %v630 = vmul.f32 %v612, %v628
    %v631 = vsel %vm216, %v527, 0
    %633 = vmatprep.subr.mxu0 0.0
    %634 = vmatpush1.msra.mxu0 %v212
    %635 = vmatprep.subr.mxu0 0.0
    %636 = vmatpush1.msra.mxu0 %v213
    %637 = vmatprep.subr.mxu0 0.0
    %638 = vmatpush1.msra.mxu0 %v214
    %639 = vmatprep.subr.mxu0 0.0
    %640 = vmatpush1.msra.mxu0 %v215
    %641 = vmatprep.subr.mxu0 0.0
    %642 = vmatpush1.msra.mxu0 0.0
    %643 = vmatprep.subr.mxu0 0.0
    %644 = vmatpush1.msra.mxu0 0.0
    %645 = vmatprep.subr.mxu0 0.0
    %646 = vmatpush1.msra.mxu0 0.0
    %647 = vmatprep.subr.mxu0 0.0
    %648 = vmatpush1.msra.mxu0 0.0
    %649 = vmatprep.subr.mxu0 0.0
    %650 = vmatpush1.msra.mxu0 0.0
    %651 = vmatprep.subr.mxu0 0.0
    %652 = vmatpush1.msra.mxu0 0.0
    %653 = vmatprep.subr.mxu0 0.0
    %654 = vmatpush1.msra.mxu0 0.0
    %655 = vmatprep.subr.mxu0 0.0
    %656 = vmatpush1.msra.mxu0 0.0
    %657 = vmatprep.subr.mxu0 0.0
    %658 = vmatpush1.msra.mxu0 0.0
    %659 = vmatprep.subr.mxu0 0.0
    %660 = vmatpush1.msra.mxu0 0.0
    %661 = vmatprep.subr.mxu0 0.0
    %662 = vmatpush1.msra.mxu0 0.0
    %663 = vmatprep.subr.mxu0 0.0
    %664 = vmatpush1.msra.mxu0 0.0
    %665 = vmatprep.subr.mxu0 0.0
    %666 = vmatpush1.msra.mxu0 0.0
    %667 = vmatprep.subr.mxu0 0.0
    %668 = vmatpush1.msra.mxu0 0.0
    %669 = vmatprep.subr.mxu0 0.0
    %670 = vmatpush1.msra.mxu0 0.0
    %671 = vmatprep.subr.mxu0 0.0
    %672 = vmatpush1.msra.mxu0 0.0
    %673 = vmatprep.subr.mxu0 0.0
    %674 = vmatpush1.msra.mxu0 0.0
    %675 = vmatprep.subr.mxu0 0.0
    %676 = vmatpush1.msra.mxu0 0.0
    %677 = vmatprep.subr.mxu0 0.0
    %678 = vmatpush1.msra.mxu0 0.0
    %679 = vmatprep.subr.mxu0 0.0
    %680 = vmatpush1.msra.mxu0 0.0
    %681 = vmatprep.subr.mxu0 0.0
    %682 = vmatpush1.msra.mxu0 0.0
    %683 = vmatprep.subr.mxu0 0.0
    %684 = vmatpush1.msra.mxu0 0.0
    %685 = vmatprep.subr.mxu0 0.0
    %686 = vmatpush1.msra.mxu0 0.0
    %687 = vmatprep.subr.mxu0 0.0
    %688 = vmatpush1.msra.mxu0 0.0
    %689 = vmatprep.subr.mxu0 0.0
    %690 = vmatpush1.msra.mxu0 0.0
    %691 = vmatprep.subr.mxu0 0.0
    %692 = vmatpush1.msra.mxu0 0.0
    %693 = vmatprep.subr.mxu0 0.0
    %694 = vmatpush1.msra.mxu0 0.0
    %695 = vmatprep.subr.mxu0 0.0
    %696 = vmatpush1.msra.mxu0 0.0
    %697 = vmatprep.mubr.f32.mxu0 0.0
    %698 = vmatmul.mubr.f32.gmra.mrb[0].mxu0 %v631
    %v699 = vpop.f32.mrb[0].mxu0
    %v700 = vadd.f32 0.0, %v699
    %v701 = vpop.f32.mrb[0].mxu0
    %702 = vdwg.mxu0
    %v703 = vadd.f32 %v184, %v700
    %v704 = vadd.f32 %v703, %v63
    %v705 = vxor.u32 %v704, 2147483648
    %v706 = vmul.f32 %v705, 1.442695
    %v707 = vpow.pop %v706
    %v708 = vadd.f32 %v707, 1.0
    %v709 = vrcp.pop %v708
    %v710 = vmul.f32 1.0, %v709
    %v711 = vtanh.pop %v704
    %v712 = vmul.f32 %v710, %v518
    %714 = vrot.lane.b32.xlu0 %v711, 64
    %v715 = vpop.permute.xlu0 %714
    %v717 = vmul.f32 %v710, %v715
    %719 = vrot.lane.b32.xlu0 %v717, 32
    %v720 = vpop.permute.xlu0 %719
    %v722 = vadd.f32 %v712, %v720
    %v723 = vtanh.pop %v722
    %725 = vrot.lane.b32.xlu0 %v723, 64
    %v726 = vpop.permute.xlu0 %725
    %v728 = vmul.f32 %v710, %v726
    %730 = vrot.lane.b32.xlu0 %v728, 32
    %v731 = vpop.permute.xlu0 %730
    %734 = vrot.lane.b32.xlu0 %v630, 64
    %v735 = vpop.permute.xlu0 %734
    %v737 = vsel %vm216, %v731, %v735
    %v739 = vsel %vm329, %v737, 0
    %741 = vmatprep.subr.mxu0 0.0
    %742 = vmatpush1.msra.mxu0 %v321
    %743 = vmatprep.subr.mxu0 0.0
    %744 = vmatpush1.msra.mxu0 %v322
    %745 = vmatprep.subr.mxu0 0.0
    %746 = vmatpush1.msra.mxu0 %v323
    %747 = vmatprep.subr.mxu0 0.0
    %748 = vmatpush1.msra.mxu0 %v324
    %749 = vmatprep.subr.mxu0 0.0
    %750 = vmatpush1.msra.mxu0 %v325
    %751 = vmatprep.subr.mxu0 0.0
    %752 = vmatpush1.msra.mxu0 %v326
    %753 = vmatprep.subr.mxu0 0.0
    %754 = vmatpush1.msra.mxu0 %v327
    %755 = vmatprep.subr.mxu0 0.0
    %756 = vmatpush1.msra.mxu0 %v328
    %757 = vmatprep.subr.mxu0 0.0
    %758 = vmatpush1.msra.mxu0 0.0
    %759 = vmatprep.subr.mxu0 0.0
    %760 = vmatpush1.msra.mxu0 0.0
    %761 = vmatprep.subr.mxu0 0.0
    %762 = vmatpush1.msra.mxu0 0.0
    %763 = vmatprep.subr.mxu0 0.0
    %764 = vmatpush1.msra.mxu0 0.0
    %765 = vmatprep.subr.mxu0 0.0
    %766 = vmatpush1.msra.mxu0 0.0
    %767 = vmatprep.subr.mxu0 0.0
    %768 = vmatpush1.msra.mxu0 0.0
    %769 = vmatprep.subr.mxu0 0.0
    %770 = vmatpush1.msra.mxu0 0.0
    %771 = vmatprep.subr.mxu0 0.0
    %772 = vmatpush1.msra.mxu0 0.0
    %773 = vmatprep.subr.mxu0 0.0
    %774 = vmatpush1.msra.mxu0 0.0
    %775 = vmatprep.subr.mxu0 0.0
    %776 = vmatpush1.msra.mxu0 0.0
    %777 = vmatprep.subr.mxu0 0.0
    %778 = vmatpush1.msra.mxu0 0.0
    %779 = vmatprep.subr.mxu0 0.0
    %780 = vmatpush1.msra.mxu0 0.0
    %781 = vmatprep.subr.mxu0 0.0
    %782 = vmatpush1.msra.mxu0 0.0
    %783 = vmatprep.subr.mxu0 0.0
    %784 = vmatpush1.msra.mxu0 0.0
    %785 = vmatprep.subr.mxu0 0.0
    %786 = vmatpush1.msra.mxu0 0.0
    %787 = vmatprep.subr.mxu0 0.0
    %788 = vmatpush1.msra.mxu0 0.0
    %789 = vmatprep.subr.mxu0 0.0
    %790 = vmatpush1.msra.mxu0 0.0
    %791 = vmatprep.subr.mxu0 0.0
    %792 = vmatpush1.msra.mxu0 0.0
    %793 = vmatprep.subr.mxu0 0.0
    %794 = vmatpush1.msra.mxu0 0.0
    %795 = vmatprep.subr.mxu0 0.0
    %796 = vmatpush1.msra.mxu0 0.0
    %797 = vmatprep.subr.mxu0 0.0
    %798 = vmatpush1.msra.mxu0 0.0
    %799 = vmatprep.subr.mxu0 0.0
    %800 = vmatpush1.msra.mxu0 0.0
    %801 = vmatprep.subr.mxu0 0.0
    %802 = vmatpush1.msra.mxu0 0.0
    %803 = vmatprep.subr.mxu0 0.0
    %804 = vmatpush1.msra.mxu0 0.0
    %805 = vmatprep.mubr.f32.mxu0 0.0
    %806 = vmatmul.mubr.f32.gmra.mrb[0].mxu0 %v739
    %v807 = vpop.f32.mrb[0].mxu0
    %v808 = vadd.f32 %v70, %v807
    %v809 = vpop.f32.mrb[0].mxu0
    %810 = vdwg.mxu0
    %v811 = vxor.u32 %v808, 2147483648
    %v812 = vmul.f32 %v811, 1.442695
    %v813 = vpow.pop %v812
    %v814 = vadd.f32 %v813, 1.0
    %v815 = vrcp.pop %v814
    %v816 = vmul.f32 1.0, %v815
    %v817 = vtanh.pop %v808
    %v818 = vmul.f32 %v816, %v624
    %820 = vrot.lane.b32.xlu0 %v817, 64
    %v821 = vpop.permute.xlu0 %820
    %v823 = vmul.f32 %v816, %v821
    %825 = vrot.lane.b32.xlu0 %v823, 32
    %v826 = vpop.permute.xlu0 %825
    %v828 = vadd.f32 %v818, %v826
    %v829 = vtanh.pop %v828
    %831 = vrot.lane.b32.xlu0 %v829, 64
    %v832 = vpop.permute.xlu0 %831
    %v834 = vmul.f32 %v816, %v832
    %v835 = vsel %vm216, %v731, 0
    %837 = vmatprep.subr.mxu0 0.0
    %838 = vmatpush1.msra.mxu0 %v212
    %839 = vmatprep.subr.mxu0 0.0
    %840 = vmatpush1.msra.mxu0 %v213
    %841 = vmatprep.subr.mxu0 0.0
    %842 = vmatpush1.msra.mxu0 %v214
    %843 = vmatprep.subr.mxu0 0.0
    %844 = vmatpush1.msra.mxu0 %v215
    %845 = vmatprep.subr.mxu0 0.0
    %846 = vmatpush1.msra.mxu0 0.0
    %847 = vmatprep.subr.mxu0 0.0
    %848 = vmatpush1.msra.mxu0 0.0
    %849 = vmatprep.subr.mxu0 0.0
    %850 = vmatpush1.msra.mxu0 0.0
    %851 = vmatprep.subr.mxu0 0.0
    %852 = vmatpush1.msra.mxu0 0.0
    %853 = vmatprep.subr.mxu0 0.0
    %854 = vmatpush1.msra.mxu0 0.0
    %855 = vmatprep.subr.mxu0 0.0
    %856 = vmatpush1.msra.mxu0 0.0
    %857 = vmatprep.subr.mxu0 0.0
    %858 = vmatpush1.msra.mxu0 0.0
    %859 = vmatprep.subr.mxu0 0.0
    %860 = vmatpush1.msra.mxu0 0.0
    %861 = vmatprep.subr.mxu0 0.0
    %862 = vmatpush1.msra.mxu0 0.0
    %863 = vmatprep.subr.mxu0 0.0
    %864 = vmatpush1.msra.mxu0 0.0
    %865 = vmatprep.subr.mxu0 0.0
    %866 = vmatpush1.msra.mxu0 0.0
    %867 = vmatprep.subr.mxu0 0.0
    %868 = vmatpush1.msra.mxu0 0.0
    %869 = vmatprep.subr.mxu0 0.0
    %870 = vmatpush1.msra.mxu0 0.0
    %871 = vmatprep.subr.mxu0 0.0
    %872 = vmatpush1.msra.mxu0 0.0
    %873 = vmatprep.subr.mxu0 0.0
    %874 = vmatpush1.msra.mxu0 0.0
    %875 = vmatprep.subr.mxu0 0.0
    %876 = vmatpush1.msra.mxu0 0.0
    %877 = vmatprep.subr.mxu0 0.0
    %878 = vmatpush1.msra.mxu0 0.0
    %879 = vmatprep.subr.mxu0 0.0
    %880 = vmatpush1.msra.mxu0 0.0
    %881 = vmatprep.subr.mxu0 0.0
    %882 = vmatpush1.msra.mxu0 0.0
    %883 = vmatprep.subr.mxu0 0.0
    %884 = vmatpush1.msra.mxu0 0.0
    %885 = vmatprep.subr.mxu0 0.0
    %886 = vmatpush1.msra.mxu0 0.0
    %887 = vmatprep.subr.mxu0 0.0
    %888 = vmatpush1.msra.mxu0 0.0
    %889 = vmatprep.subr.mxu0 0.0
    %890 = vmatpush1.msra.mxu0 0.0
    %891 = vmatprep.subr.mxu0 0.0
    %892 = vmatpush1.msra.mxu0 0.0
    %893 = vmatprep.subr.mxu0 0.0
    %894 = vmatpush1.msra.mxu0 0.0
    %895 = vmatprep.subr.mxu0 0.0
    %896 = vmatpush1.msra.mxu0 0.0
    %897 = vmatprep.subr.mxu0 0.0
    %898 = vmatpush1.msra.mxu0 0.0
    %899 = vmatprep.subr.mxu0 0.0
    %900 = vmatpush1.msra.mxu0 0.0
    %901 = vmatprep.mubr.f32.mxu0 0.0
    %902 = vmatmul.mubr.f32.gmra.mrb[0].mxu0 %v835
    %v903 = vpop.f32.mrb[0].mxu0
    %v904 = vadd.f32 0.0, %v903
    %v905 = vpop.f32.mrb[0].mxu0
    %906 = vdwg.mxu0
    %v907 = vadd.f32 %v189, %v904
    %v908 = vadd.f32 %v907, %v63
    %v909 = vxor.u32 %v908, 2147483648
    %v910 = vmul.f32 %v909, 1.442695
    %v911 = vpow.pop %v910
    %v912 = vadd.f32 %v911, 1.0
    %v913 = vrcp.pop %v912
    %v914 = vmul.f32 1.0, %v913
    %v915 = vtanh.pop %v908
    %v916 = vmul.f32 %v914, %v722
    %918 = vrot.lane.b32.xlu0 %v915, 64
    %v919 = vpop.permute.xlu0 %918
    %v921 = vmul.f32 %v914, %v919
    %923 = vrot.lane.b32.xlu0 %v921, 32
    %v924 = vpop.permute.xlu0 %923
    %v926 = vadd.f32 %v916, %v924
    %v927 = vtanh.pop %v926
    %929 = vrot.lane.b32.xlu0 %v927, 64
    %v930 = vpop.permute.xlu0 %929
    %v932 = vmul.f32 %v914, %v930
    %934 = vrot.lane.b32.xlu0 %v932, 32
    %v935 = vpop.permute.xlu0 %934
    %938 = vrot.lane.b32.xlu0 %v834, 64
    %v939 = vpop.permute.xlu0 %938
    %v941 = vsel %vm216, %v935, %v939
    %v943 = vsel %vm329, %v941, 0
    %945 = vmatprep.subr.mxu0 0.0
    %946 = vmatpush1.msra.mxu0 %v321
    %947 = vmatprep.subr.mxu0 0.0
    %948 = vmatpush1.msra.mxu0 %v322
    %949 = vmatprep.subr.mxu0 0.0
    %950 = vmatpush1.msra.mxu0 %v323
    %951 = vmatprep.subr.mxu0 0.0
    %952 = vmatpush1.msra.mxu0 %v324
    %953 = vmatprep.subr.mxu0 0.0
    %954 = vmatpush1.msra.mxu0 %v325
    %955 = vmatprep.subr.mxu0 0.0
    %956 = vmatpush1.msra.mxu0 %v326
    %957 = vmatprep.subr.mxu0 0.0
    %958 = vmatpush1.msra.mxu0 %v327
    %959 = vmatprep.subr.mxu0 0.0
    %960 = vmatpush1.msra.mxu0 %v328
    %961 = vmatprep.subr.mxu0 0.0
    %962 = vmatpush1.msra.mxu0 0.0
    %963 = vmatprep.subr.mxu0 0.0
    %964 = vmatpush1.msra.mxu0 0.0
    %965 = vmatprep.subr.mxu0 0.0
    %966 = vmatpush1.msra.mxu0 0.0
    %967 = vmatprep.subr.mxu0 0.0
    %968 = vmatpush1.msra.mxu0 0.0
    %969 = vmatprep.subr.mxu0 0.0
    %970 = vmatpush1.msra.mxu0 0.0
    %971 = vmatprep.subr.mxu0 0.0
    %972 = vmatpush1.msra.mxu0 0.0
    %973 = vmatprep.subr.mxu0 0.0
    %974 = vmatpush1.msra.mxu0 0.0
    %975 = vmatprep.subr.mxu0 0.0
    %976 = vmatpush1.msra.mxu0 0.0
    %977 = vmatprep.subr.mxu0 0.0
    %978 = vmatpush1.msra.mxu0 0.0
    %979 = vmatprep.subr.mxu0 0.0
    %980 = vmatpush1.msra.mxu0 0.0
    %981 = vmatprep.subr.mxu0 0.0
    %982 = vmatpush1.msra.mxu0 0.0
    %983 = vmatprep.subr.mxu0 0.0
    %984 = vmatpush1.msra.mxu0 0.0
    %985 = vmatprep.subr.mxu0 0.0
    %986 = vmatpush1.msra.mxu0 0.0
    %987 = vmatprep.subr.mxu0 0.0
    %988 = vmatpush1.msra.mxu0 0.0
    %989 = vmatprep.subr.mxu0 0.0
    %990 = vmatpush1.msra.mxu0 0.0
    %991 = vmatprep.subr.mxu0 0.0
    %992 = vmatpush1.msra.mxu0 0.0
    %993 = vmatprep.subr.mxu0 0.0
    %994 = vmatpush1.msra.mxu0 0.0
    %995 = vmatprep.subr.mxu0 0.0
    %996 = vmatpush1.msra.mxu0 0.0
    %997 = vmatprep.subr.mxu0 0.0
    %998 = vmatpush1.msra.mxu0 0.0
    %999 = vmatprep.subr.mxu0 0.0
    %1000 = vmatpush1.msra.mxu0 0.0
    %1001 = vmatprep.subr.mxu0 0.0
    %1002 = vmatpush1.msra.mxu0 0.0
    %1003 = vmatprep.subr.mxu0 0.0
    %1004 = vmatpush1.msra.mxu0 0.0
    %1005 = vmatprep.subr.mxu0 0.0
    %1006 = vmatpush1.msra.mxu0 0.0
    %1007 = vmatprep.subr.mxu0 0.0
    %1008 = vmatpush1.msra.mxu0 0.0
    %1009 = vmatprep.mubr.f32.mxu0 0.0
    %1010 = vmatmul.mubr.f32.gmra.mrb[0].mxu0 %v943
    %v1011 = vpop.f32.mrb[0].mxu0
    %v1012 = vadd.f32 %v70, %v1011
    %v1013 = vpop.f32.mrb[0].mxu0
    %1014 = vdwg.mxu0
    %v1015 = vxor.u32 %v1012, 2147483648
    %v1016 = vmul.f32 %v1015, 1.442695
    %v1017 = vpow.pop %v1016
    %v1018 = vadd.f32 %v1017, 1.0
    %v1019 = vrcp.pop %v1018
    %v1020 = vmul.f32 1.0, %v1019
    %v1021 = vtanh.pop %v1012
    %v1022 = vmul.f32 %v1020, %v828
    %1024 = vrot.lane.b32.xlu0 %v1021, 64
    %v1025 = vpop.permute.xlu0 %1024
    %v1027 = vmul.f32 %v1020, %v1025
    %1029 = vrot.lane.b32.xlu0 %v1027, 32
    %v1030 = vpop.permute.xlu0 %1029
    %v1032 = vadd.f32 %v1022, %v1030
    %v1033 = vtanh.pop %v1032
    %1035 = vrot.lane.b32.xlu0 %v1033, 64
    %v1036 = vpop.permute.xlu0 %1035
    %v1038 = vmul.f32 %v1020, %v1036
    %v1039 = vsel %vm216, %v935, 0
    %1041 = vmatprep.subr.mxu0 0.0
    %1042 = vmatpush1.msra.mxu0 %v212
    %1043 = vmatprep.subr.mxu0 0.0
    %1044 = vmatpush1.msra.mxu0 %v213
    %1045 = vmatprep.subr.mxu0 0.0
    %1046 = vmatpush1.msra.mxu0 %v214
    %1047 = vmatprep.subr.mxu0 0.0
    %1048 = vmatpush1.msra.mxu0 %v215
    %1049 = vmatprep.subr.mxu0 0.0
    %1050 = vmatpush1.msra.mxu0 0.0
    %1051 = vmatprep.subr.mxu0 0.0
    %1052 = vmatpush1.msra.mxu0 0.0
    %1053 = vmatprep.subr.mxu0 0.0
    %1054 = vmatpush1.msra.mxu0 0.0
    %1055 = vmatprep.subr.mxu0 0.0
    %1056 = vmatpush1.msra.mxu0 0.0
    %1057 = vmatprep.subr.mxu0 0.0
    %1058 = vmatpush1.msra.mxu0 0.0
    %1059 = vmatprep.subr.mxu0 0.0
    %1060 = vmatpush1.msra.mxu0 0.0
    %1061 = vmatprep.subr.mxu0 0.0
    %1062 = vmatpush1.msra.mxu0 0.0
    %1063 = vmatprep.subr.mxu0 0.0
    %1064 = vmatpush1.msra.mxu0 0.0
    %1065 = vmatprep.subr.mxu0 0.0
    %1066 = vmatpush1.msra.mxu0 0.0
    %1067 = vmatprep.subr.mxu0 0.0
    %1068 = vmatpush1.msra.mxu0 0.0
    %1069 = vmatprep.subr.mxu0 0.0
    %1070 = vmatpush1.msra.mxu0 0.0
    %1071 = vmatprep.subr.mxu0 0.0
    %1072 = vmatpush1.msra.mxu0 0.0
    %1073 = vmatprep.subr.mxu0 0.0
    %1074 = vmatpush1.msra.mxu0 0.0
    %1075 = vmatprep.subr.mxu0 0.0
    %1076 = vmatpush1.msra.mxu0 0.0
    %1077 = vmatprep.subr.mxu0 0.0
    %1078 = vmatpush1.msra.mxu0 0.0
    %1079 = vmatprep.subr.mxu0 0.0
    %1080 = vmatpush1.msra.mxu0 0.0
    %1081 = vmatprep.subr.mxu0 0.0
    %1082 = vmatpush1.msra.mxu0 0.0
    %1083 = vmatprep.subr.mxu0 0.0
    %1084 = vmatpush1.msra.mxu0 0.0
    %1085 = vmatprep.subr.mxu0 0.0
    %1086 = vmatpush1.msra.mxu0 0.0
    %1087 = vmatprep.subr.mxu0 0.0
    %1088 = vmatpush1.msra.mxu0 0.0
    %1089 = vmatprep.subr.mxu0 0.0
    %1090 = vmatpush1.msra.mxu0 0.0
    %1091 = vmatprep.subr.mxu0 0.0
    %1092 = vmatpush1.msra.mxu0 0.0
    %1093 = vmatprep.subr.mxu0 0.0
    %1094 = vmatpush1.msra.mxu0 0.0
    %1095 = vmatprep.subr.mxu0 0.0
    %1096 = vmatpush1.msra.mxu0 0.0
    %1097 = vmatprep.subr.mxu0 0.0
    %1098 = vmatpush1.msra.mxu0 0.0
    %1099 = vmatprep.subr.mxu0 0.0
    %1100 = vmatpush1.msra.mxu0 0.0
    %1101 = vmatprep.subr.mxu0 0.0
    %1102 = vmatpush1.msra.mxu0 0.0
    %1103 = vmatprep.subr.mxu0 0.0
    %1104 = vmatpush1.msra.mxu0 0.0
    %1105 = vmatprep.mubr.f32.mxu0 0.0
    %1106 = vmatmul.mubr.f32.gmra.mrb[0].mxu0 %v1039
    %v1107 = vpop.f32.mrb[0].mxu0
    %v1108 = vadd.f32 0.0, %v1107
    %v1109 = vpop.f32.mrb[0].mxu0
    %1110 = vdwg.mxu0
    %v1111 = vadd.f32 %v194, %v1108
    %v1112 = vadd.f32 %v1111, %v63
    %v1113 = vxor.u32 %v1112, 2147483648
    %v1114 = vmul.f32 %v1113, 1.442695
    %v1115 = vpow.pop %v1114
    %v1116 = vadd.f32 %v1115, 1.0
    %v1117 = vrcp.pop %v1116
    %v1118 = vmul.f32 1.0, %v1117
    %v1119 = vtanh.pop %v1112
    %v1120 = vmul.f32 %v1118, %v926
    %1122 = vrot.lane.b32.xlu0 %v1119, 64
    %v1123 = vpop.permute.xlu0 %1122
    %v1125 = vmul.f32 %v1118, %v1123
    %1127 = vrot.lane.b32.xlu0 %v1125, 32
    %v1128 = vpop.permute.xlu0 %1127
    %v1130 = vadd.f32 %v1120, %v1128
    %v1131 = vtanh.pop %v1130
    %1133 = vrot.lane.b32.xlu0 %v1131, 64
    %v1134 = vpop.permute.xlu0 %1133
    %v1136 = vmul.f32 %v1118, %v1134
    %1138 = vrot.lane.b32.xlu0 %v1136, 32
    %v1139 = vpop.permute.xlu0 %1138
    %1142 = vrot.lane.b32.xlu0 %v1038, 64
    %v1143 = vpop.permute.xlu0 %1142
    %v1145 = vsel %vm216, %v1139, %v1143
    %v1147 = vsel %vm329, %v1145, 0
    %1149 = vmatprep.subr.mxu0 0.0
    %1150 = vmatpush1.msra.mxu0 %v321
    %1151 = vmatprep.subr.mxu0 0.0
    %1152 = vmatpush1.msra.mxu0 %v322
    %1153 = vmatprep.subr.mxu0 0.0
    %1154 = vmatpush1.msra.mxu0 %v323
    %1155 = vmatprep.subr.mxu0 0.0
    %1156 = vmatpush1.msra.mxu0 %v324
    %1157 = vmatprep.subr.mxu0 0.0
    %1158 = vmatpush1.msra.mxu0 %v325
    %1159 = vmatprep.subr.mxu0 0.0
    %1160 = vmatpush1.msra.mxu0 %v326
    %1161 = vmatprep.subr.mxu0 0.0
    %1162 = vmatpush1.msra.mxu0 %v327
    %1163 = vmatprep.subr.mxu0 0.0
    %1164 = vmatpush1.msra.mxu0 %v328
    %1165 = vmatprep.subr.mxu0 0.0
    %1166 = vmatpush1.msra.mxu0 0.0
    %1167 = vmatprep.subr.mxu0 0.0
    %1168 = vmatpush1.msra.mxu0 0.0
    %1169 = vmatprep.subr.mxu0 0.0
    %1170 = vmatpush1.msra.mxu0 0.0
    %1171 = vmatprep.subr.mxu0 0.0
    %1172 = vmatpush1.msra.mxu0 0.0
    %1173 = vmatprep.subr.mxu0 0.0
    %1174 = vmatpush1.msra.mxu0 0.0
    %1175 = vmatprep.subr.mxu0 0.0
    %1176 = vmatpush1.msra.mxu0 0.0
    %1177 = vmatprep.subr.mxu0 0.0
    %1178 = vmatpush1.msra.mxu0 0.0
    %1179 = vmatprep.subr.mxu0 0.0
    %1180 = vmatpush1.msra.mxu0 0.0
    %1181 = vmatprep.subr.mxu0 0.0
    %1182 = vmatpush1.msra.mxu0 0.0
    %1183 = vmatprep.subr.mxu0 0.0
    %1184 = vmatpush1.msra.mxu0 0.0
    %1185 = vmatprep.subr.mxu0 0.0
    %1186 = vmatpush1.msra.mxu0 0.0
    %1187 = vmatprep.subr.mxu0 0.0
    %1188 = vmatpush1.msra.mxu0 0.0
    %1189 = vmatprep.subr.mxu0 0.0
    %1190 = vmatpush1.msra.mxu0 0.0
    %1191 = vmatprep.subr.mxu0 0.0
    %1192 = vmatpush1.msra.mxu0 0.0
    %1193 = vmatprep.subr.mxu0 0.0
    %1194 = vmatpush1.msra.mxu0 0.0
    %1195 = vmatprep.subr.mxu0 0.0
    %1196 = vmatpush1.msra.mxu0 0.0
    %1197 = vmatprep.subr.mxu0 0.0
    %1198 = vmatpush1.msra.mxu0 0.0
    %1199 = vmatprep.subr.mxu0 0.0
    %1200 = vmatpush1.msra.mxu0 0.0
    %1201 = vmatprep.subr.mxu0 0.0
    %1202 = vmatpush1.msra.mxu0 0.0
    %1203 = vmatprep.subr.mxu0 0.0
    %1204 = vmatpush1.msra.mxu0 0.0
    %1205 = vmatprep.subr.mxu0 0.0
    %1206 = vmatpush1.msra.mxu0 0.0
    %1207 = vmatprep.subr.mxu0 0.0
    %1208 = vmatpush1.msra.mxu0 0.0
    %1209 = vmatprep.subr.mxu0 0.0
    %1210 = vmatpush1.msra.mxu0 0.0
    %1211 = vmatprep.subr.mxu0 0.0
    %1212 = vmatpush1.msra.mxu0 0.0
    %1213 = vmatprep.mubr.f32.mxu0 0.0
    %1214 = vmatmul.mubr.f32.gmra.mrb[0].mxu0 %v1147
    %v1215 = vpop.f32.mrb[0].mxu0
    %v1216 = vadd.f32 %v70, %v1215
    %v1217 = vpop.f32.mrb[0].mxu0
    %1218 = vdwg.mxu0
    %v1219 = vxor.u32 %v1216, 2147483648
    %v1220 = vmul.f32 %v1219, 1.442695
    %v1221 = vpow.pop %v1220
    %v1222 = vadd.f32 %v1221, 1.0
    %v1223 = vrcp.pop %v1222
    %v1224 = vmul.f32 1.0, %v1223
    %v1225 = vtanh.pop %v1216
    %v1226 = vmul.f32 %v1224, %v1032
    %1228 = vrot.lane.b32.xlu0 %v1225, 64
    %v1229 = vpop.permute.xlu0 %1228
    %v1231 = vmul.f32 %v1224, %v1229
    %1233 = vrot.lane.b32.xlu0 %v1231, 32
    %v1234 = vpop.permute.xlu0 %1233
    %v1236 = vadd.f32 %v1226, %v1234
    %v1237 = vtanh.pop %v1236
    %1239 = vrot.lane.b32.xlu0 %v1237, 64
    %v1240 = vpop.permute.xlu0 %1239
    %v1242 = vmul.f32 %v1224, %v1240
    %v1243 = vsel %vm216, %v1139, 0
    %1245 = vmatprep.subr.mxu0 0.0
    %1246 = vmatpush1.msra.mxu0 %v212
    %1247 = vmatprep.subr.mxu0 0.0
    %1248 = vmatpush1.msra.mxu0 %v213
    %1249 = vmatprep.subr.mxu0 0.0
    %1250 = vmatpush1.msra.mxu0 %v214
    %1251 = vmatprep.subr.mxu0 0.0
    %1252 = vmatpush1.msra.mxu0 %v215
    %1253 = vmatprep.subr.mxu0 0.0
    %1254 = vmatpush1.msra.mxu0 0.0
    %1255 = vmatprep.subr.mxu0 0.0
    %1256 = vmatpush1.msra.mxu0 0.0
    %1257 = vmatprep.subr.mxu0 0.0
    %1258 = vmatpush1.msra.mxu0 0.0
    %1259 = vmatprep.subr.mxu0 0.0
    %1260 = vmatpush1.msra.mxu0 0.0
    %1261 = vmatprep.subr.mxu0 0.0
    %1262 = vmatpush1.msra.mxu0 0.0
    %1263 = vmatprep.subr.mxu0 0.0
    %1264 = vmatpush1.msra.mxu0 0.0
    %1265 = vmatprep.subr.mxu0 0.0
    %1266 = vmatpush1.msra.mxu0 0.0
    %1267 = vmatprep.subr.mxu0 0.0
    %1268 = vmatpush1.msra.mxu0 0.0
    %1269 = vmatprep.subr.mxu0 0.0
    %1270 = vmatpush1.msra.mxu0 0.0
    %1271 = vmatprep.subr.mxu0 0.0
    %1272 = vmatpush1.msra.mxu0 0.0
    %1273 = vmatprep.subr.mxu0 0.0
    %1274 = vmatpush1.msra.mxu0 0.0
    %1275 = vmatprep.subr.mxu0 0.0
    %1276 = vmatpush1.msra.mxu0 0.0
    %1277 = vmatprep.subr.mxu0 0.0
    %1278 = vmatpush1.msra.mxu0 0.0
    %1279 = vmatprep.subr.mxu0 0.0
    %1280 = vmatpush1.msra.mxu0 0.0
    %1281 = vmatprep.subr.mxu0 0.0
    %1282 = vmatpush1.msra.mxu0 0.0
    %1283 = vmatprep.subr.mxu0 0.0
    %1284 = vmatpush1.msra.mxu0 0.0
    %1285 = vmatprep.subr.mxu0 0.0
    %1286 = vmatpush1.msra.mxu0 0.0
    %1287 = vmatprep.subr.mxu0 0.0
    %1288 = vmatpush1.msra.mxu0 0.0
    %1289 = vmatprep.subr.mxu0 0.0
    %1290 = vmatpush1.msra.mxu0 0.0
    %1291 = vmatprep.subr.mxu0 0.0
    %1292 = vmatpush1.msra.mxu0 0.0
    %1293 = vmatprep.subr.mxu0 0.0
    %1294 = vmatpush1.msra.mxu0 0.0
    %1295 = vmatprep.subr.mxu0 0.0
    %1296 = vmatpush1.msra.mxu0 0.0
    %1297 = vmatprep.subr.mxu0 0.0
    %1298 = vmatpush1.msra.mxu0 0.0
    %1299 = vmatprep.subr.mxu0 0.0
    %1300 = vmatpush1.msra.mxu0 0.0
    %1301 = vmatprep.subr.mxu0 0.0
    %1302 = vmatpush1.msra.mxu0 0.0
    %1303 = vmatprep.subr.mxu0 0.0
    %1304 = vmatpush1.msra.mxu0 0.0
    %1305 = vmatprep.subr.mxu0 0.0
    %1306 = vmatpush1.msra.mxu0 0.0
    %1307 = vmatprep.subr.mxu0 0.0
    %1308 = vmatpush1.msra.mxu0 0.0
    %1309 = vmatprep.mubr.f32.mxu0 0.0
    %1310 = vmatmul.mubr.f32.gmra.mrb[0].mxu0 %v1243
    %v1311 = vpop.f32.mrb[0].mxu0
    %v1312 = vadd.f32 0.0, %v1311
    %v1313 = vpop.f32.mrb[0].mxu0
    %1314 = vdwg.mxu0
    %v1315 = vadd.f32 %v199, %v1312
    %v1316 = vadd.f32 %v1315, %v63
    %v1317 = vxor.u32 %v1316, 2147483648
    %v1318 = vmul.f32 %v1317, 1.442695
    %v1319 = vpow.pop %v1318
    %v1320 = vadd.f32 %v1319, 1.0
    %v1321 = vrcp.pop %v1320
    %v1322 = vmul.f32 1.0, %v1321
    %v1323 = vtanh.pop %v1316
    %v1324 = vmul.f32 %v1322, %v1130
    %1326 = vrot.lane.b32.xlu0 %v1323, 64
    %v1327 = vpop.permute.xlu0 %1326
    %v1329 = vmul.f32 %v1322, %v1327
    %1331 = vrot.lane.b32.xlu0 %v1329, 32
    %v1332 = vpop.permute.xlu0 %1331
    %v1334 = vadd.f32 %v1324, %v1332
    %v1335 = vtanh.pop %v1334
    %1337 = vrot.lane.b32.xlu0 %v1335, 64
    %v1338 = vpop.permute.xlu0 %1337
    %v1340 = vmul.f32 %v1322, %v1338
    %1342 = vrot.lane.b32.xlu0 %v1340, 32
    %v1343 = vpop.permute.xlu0 %1342
    %1346 = vrot.lane.b32.xlu0 %v1242, 64
    %v1347 = vpop.permute.xlu0 %1346
    %v1349 = vsel %vm216, %v1343, %v1347
    %v1351 = vsel %vm329, %v1349, 0
    %1353 = vmatprep.subr.mxu0 0.0
    %1354 = vmatpush1.msra.mxu0 %v321
    %1355 = vmatprep.subr.mxu0 0.0
    %1356 = vmatpush1.msra.mxu0 %v322
    %1357 = vmatprep.subr.mxu0 0.0
    %1358 = vmatpush1.msra.mxu0 %v323
    %1359 = vmatprep.subr.mxu0 0.0
    %1360 = vmatpush1.msra.mxu0 %v324
    %1361 = vmatprep.subr.mxu0 0.0
    %1362 = vmatpush1.msra.mxu0 %v325
    %1363 = vmatprep.subr.mxu0 0.0
    %1364 = vmatpush1.msra.mxu0 %v326
    %1365 = vmatprep.subr.mxu0 0.0
    %1366 = vmatpush1.msra.mxu0 %v327
    %1367 = vmatprep.subr.mxu0 0.0
    %1368 = vmatpush1.msra.mxu0 %v328
    %1369 = vmatprep.subr.mxu0 0.0
    %1370 = vmatpush1.msra.mxu0 0.0
    %1371 = vmatprep.subr.mxu0 0.0
    %1372 = vmatpush1.msra.mxu0 0.0
    %1373 = vmatprep.subr.mxu0 0.0
    %1374 = vmatpush1.msra.mxu0 0.0
    %1375 = vmatprep.subr.mxu0 0.0
    %1376 = vmatpush1.msra.mxu0 0.0
    %1377 = vmatprep.subr.mxu0 0.0
    %1378 = vmatpush1.msra.mxu0 0.0
    %1379 = vmatprep.subr.mxu0 0.0
    %1380 = vmatpush1.msra.mxu0 0.0
    %1381 = vmatprep.subr.mxu0 0.0
    %1382 = vmatpush1.msra.mxu0 0.0
    %1383 = vmatprep.subr.mxu0 0.0
    %1384 = vmatpush1.msra.mxu0 0.0
    %1385 = vmatprep.subr.mxu0 0.0
    %1386 = vmatpush1.msra.mxu0 0.0
    %1387 = vmatprep.subr.mxu0 0.0
    %1388 = vmatpush1.msra.mxu0 0.0
    %1389 = vmatprep.subr.mxu0 0.0
    %1390 = vmatpush1.msra.mxu0 0.0
    %1391 = vmatprep.subr.mxu0 0.0
    %1392 = vmatpush1.msra.mxu0 0.0
    %1393 = vmatprep.subr.mxu0 0.0
    %1394 = vmatpush1.msra.mxu0 0.0
    %1395 = vmatprep.subr.mxu0 0.0
    %1396 = vmatpush1.msra.mxu0 0.0
    %1397 = vmatprep.subr.mxu0 0.0
    %1398 = vmatpush1.msra.mxu0 0.0
    %1399 = vmatprep.subr.mxu0 0.0
    %1400 = vmatpush1.msra.mxu0 0.0
    %1401 = vmatprep.subr.mxu0 0.0
    %1402 = vmatpush1.msra.mxu0 0.0
    %1403 = vmatprep.subr.mxu0 0.0
    %1404 = vmatpush1.msra.mxu0 0.0
    %1405 = vmatprep.subr.mxu0 0.0
    %1406 = vmatpush1.msra.mxu0 0.0
    %1407 = vmatprep.subr.mxu0 0.0
    %1408 = vmatpush1.msra.mxu0 0.0
    %1409 = vmatprep.subr.mxu0 0.0
    %1410 = vmatpush1.msra.mxu0 0.0
    %1411 = vmatprep.subr.mxu0 0.0
    %1412 = vmatpush1.msra.mxu0 0.0
    %1413 = vmatprep.subr.mxu0 0.0
    %1414 = vmatpush1.msra.mxu0 0.0
    %1415 = vmatprep.subr.mxu0 0.0
    %1416 = vmatpush1.msra.mxu0 0.0
    %1417 = vmatprep.mubr.f32.mxu0 0.0
    %1418 = vmatmul.mubr.f32.gmra.mrb[0].mxu0 %v1351
    %v1419 = vpop.f32.mrb[0].mxu0
    %v1420 = vadd.f32 %v70, %v1419
    %v1421 = vpop.f32.mrb[0].mxu0
    %1422 = vdwg.mxu0
    %v1423 = vxor.u32 %v1420, 2147483648
    %v1424 = vmul.f32 %v1423, 1.442695
    %v1425 = vpow.pop %v1424
    %v1426 = vadd.f32 %v1425, 1.0
    %v1427 = vrcp.pop %v1426
    %v1428 = vmul.f32 1.0, %v1427
    %v1429 = vtanh.pop %v1420
    %v1430 = vmul.f32 %v1428, %v1236
    %1432 = vrot.lane.b32.xlu0 %v1429, 64
    %v1433 = vpop.permute.xlu0 %1432
    %v1435 = vmul.f32 %v1428, %v1433
    %1437 = vrot.lane.b32.xlu0 %v1435, 32
    %v1438 = vpop.permute.xlu0 %1437
    %v1440 = vadd.f32 %v1430, %v1438
    %v1441 = vtanh.pop %v1440
    %1443 = vrot.lane.b32.xlu0 %v1441, 64
    %v1444 = vpop.permute.xlu0 %1443
    %v1446 = vmul.f32 %v1428, %v1444
    %v1447 = vsel %vm216, %v1343, 0
    %1449 = vmatprep.subr.mxu0 0.0
    %1450 = vmatpush1.msra.mxu0 %v212
    %1451 = vmatprep.subr.mxu0 0.0
    %1452 = vmatpush1.msra.mxu0 %v213
    %1453 = vmatprep.subr.mxu0 0.0
    %1454 = vmatpush1.msra.mxu0 %v214
    %1455 = vmatprep.subr.mxu0 0.0
    %1456 = vmatpush1.msra.mxu0 %v215
    %1457 = vmatprep.subr.mxu0 0.0
    %1458 = vmatpush1.msra.mxu0 0.0
    %1459 = vmatprep.subr.mxu0 0.0
    %1460 = vmatpush1.msra.mxu0 0.0
    %1461 = vmatprep.subr.mxu0 0.0
    %1462 = vmatpush1.msra.mxu0 0.0
    %1463 = vmatprep.subr.mxu0 0.0
    %1464 = vmatpush1.msra.mxu0 0.0
    %1465 = vmatprep.subr.mxu0 0.0
    %1466 = vmatpush1.msra.mxu0 0.0
    %1467 = vmatprep.subr.mxu0 0.0
    %1468 = vmatpush1.msra.mxu0 0.0
    %1469 = vmatprep.subr.mxu0 0.0
    %1470 = vmatpush1.msra.mxu0 0.0
    %1471 = vmatprep.subr.mxu0 0.0
    %1472 = vmatpush1.msra.mxu0 0.0
    %1473 = vmatprep.subr.mxu0 0.0
    %1474 = vmatpush1.msra.mxu0 0.0
    %1475 = vmatprep.subr.mxu0 0.0
    %1476 = vmatpush1.msra.mxu0 0.0
    %1477 = vmatprep.subr.mxu0 0.0
    %1478 = vmatpush1.msra.mxu0 0.0
    %1479 = vmatprep.subr.mxu0 0.0
    %1480 = vmatpush1.msra.mxu0 0.0
    %1481 = vmatprep.subr.mxu0 0.0
    %1482 = vmatpush1.msra.mxu0 0.0
    %1483 = vmatprep.subr.mxu0 0.0
    %1484 = vmatpush1.msra.mxu0 0.0
    %1485 = vmatprep.subr.mxu0 0.0
    %1486 = vmatpush1.msra.mxu0 0.0
    %1487 = vmatprep.subr.mxu0 0.0
    %1488 = vmatpush1.msra.mxu0 0.0
    %1489 = vmatprep.subr.mxu0 0.0
    %1490 = vmatpush1.msra.mxu0 0.0
    %1491 = vmatprep.subr.mxu0 0.0
    %1492 = vmatpush1.msra.mxu0 0.0
    %1493 = vmatprep.subr.mxu0 0.0
    %1494 = vmatpush1.msra.mxu0 0.0
    %1495 = vmatprep.subr.mxu0 0.0
    %1496 = vmatpush1.msra.mxu0 0.0
    %1497 = vmatprep.subr.mxu0 0.0
    %1498 = vmatpush1.msra.mxu0 0.0
    %1499 = vmatprep.subr.mxu0 0.0
    %1500 = vmatpush1.msra.mxu0 0.0
    %1501 = vmatprep.subr.mxu0 0.0
    %1502 = vmatpush1.msra.mxu0 0.0
    %1503 = vmatprep.subr.mxu0 0.0
    %1504 = vmatpush1.msra.mxu0 0.0
    %1505 = vmatprep.subr.mxu0 0.0
    %1506 = vmatpush1.msra.mxu0 0.0
    %1507 = vmatprep.subr.mxu0 0.0
    %1508 = vmatpush1.msra.mxu0 0.0
    %1509 = vmatprep.subr.mxu0 0.0
    %1510 = vmatpush1.msra.mxu0 0.0
    %1511 = vmatprep.subr.mxu0 0.0
    %1512 = vmatpush1.msra.mxu0 0.0
    %1513 = vmatprep.mubr.f32.mxu0 0.0
    %1514 = vmatmul.mubr.f32.gmra.mrb[0].mxu0 %v1447
    %v1515 = vpop.f32.mrb[0].mxu0
    %v1516 = vadd.f32 0.0, %v1515
    %v1517 = vpop.f32.mrb[0].mxu0
    %1518 = vdwg.mxu0
    %v1519 = vadd.f32 %v204, %v1516
    %v1520 = vadd.f32 %v1519, %v63
    %v1521 = vxor.u32 %v1520, 2147483648
    %v1522 = vmul.f32 %v1521, 1.442695
    %v1523 = vpow.pop %v1522
    %v1524 = vadd.f32 %v1523, 1.0
    %v1525 = vrcp.pop %v1524
    %v1526 = vmul.f32 1.0, %v1525
    %v1527 = vtanh.pop %v1520
    %v1528 = vmul.f32 %v1526, %v1334
    %1530 = vrot.lane.b32.xlu0 %v1527, 64
    %v1531 = vpop.permute.xlu0 %1530
    %v1533 = vmul.f32 %v1526, %v1531
    %1535 = vrot.lane.b32.xlu0 %v1533, 32
    %v1536 = vpop.permute.xlu0 %1535
    %v1538 = vadd.f32 %v1528, %v1536
    %v1539 = vtanh.pop %v1538
    %1541 = vrot.lane.b32.xlu0 %v1539, 64
    %v1542 = vpop.permute.xlu0 %1541
    %v1544 = vmul.f32 %v1526, %v1542
    %1546 = vrot.lane.b32.xlu0 %v1544, 32
    %v1547 = vpop.permute.xlu0 %1546
    %1550 = vrot.lane.b32.xlu0 %v1446, 64
    %v1551 = vpop.permute.xlu0 %1550
    %v1553 = vsel %vm216, %v1547, %v1551
    %v1555 = vsel %vm329, %v1553, 0
    %1557 = vmatprep.subr.mxu0 0.0
    %1558 = vmatpush1.msra.mxu0 %v321
    %1559 = vmatprep.subr.mxu0 0.0
    %1560 = vmatpush1.msra.mxu0 %v322
    %1561 = vmatprep.subr.mxu0 0.0
    %1562 = vmatpush1.msra.mxu0 %v323
    %1563 = vmatprep.subr.mxu0 0.0
    %1564 = vmatpush1.msra.mxu0 %v324
    %1565 = vmatprep.subr.mxu0 0.0
    %1566 = vmatpush1.msra.mxu0 %v325
    %1567 = vmatprep.subr.mxu0 0.0
    %1568 = vmatpush1.msra.mxu0 %v326
    %1569 = vmatprep.subr.mxu0 0.0
    %1570 = vmatpush1.msra.mxu0 %v327
    %1571 = vmatprep.subr.mxu0 0.0
    %1572 = vmatpush1.msra.mxu0 %v328
    %1573 = vmatprep.subr.mxu0 0.0
    %1574 = vmatpush1.msra.mxu0 0.0
    %1575 = vmatprep.subr.mxu0 0.0
    %1576 = vmatpush1.msra.mxu0 0.0
    %1577 = vmatprep.subr.mxu0 0.0
    %1578 = vmatpush1.msra.mxu0 0.0
    %1579 = vmatprep.subr.mxu0 0.0
    %1580 = vmatpush1.msra.mxu0 0.0
    %1581 = vmatprep.subr.mxu0 0.0
    %1582 = vmatpush1.msra.mxu0 0.0
    %1583 = vmatprep.subr.mxu0 0.0
    %1584 = vmatpush1.msra.mxu0 0.0
    %1585 = vmatprep.subr.mxu0 0.0
    %1586 = vmatpush1.msra.mxu0 0.0
    %1587 = vmatprep.subr.mxu0 0.0
    %1588 = vmatpush1.msra.mxu0 0.0
    %1589 = vmatprep.subr.mxu0 0.0
    %1590 = vmatpush1.msra.mxu0 0.0
    %1591 = vmatprep.subr.mxu0 0.0
    %1592 = vmatpush1.msra.mxu0 0.0
    %1593 = vmatprep.subr.mxu0 0.0
    %1594 = vmatpush1.msra.mxu0 0.0
    %1595 = vmatprep.subr.mxu0 0.0
    %1596 = vmatpush1.msra.mxu0 0.0
    %1597 = vmatprep.subr.mxu0 0.0
    %1598 = vmatpush1.msra.mxu0 0.0
    %1599 = vmatprep.subr.mxu0 0.0
    %1600 = vmatpush1.msra.mxu0 0.0
    %1601 = vmatprep.subr.mxu0 0.0
    %1602 = vmatpush1.msra.mxu0 0.0
    %1603 = vmatprep.subr.mxu0 0.0
    %1604 = vmatpush1.msra.mxu0 0.0
    %1605 = vmatprep.subr.mxu0 0.0
    %1606 = vmatpush1.msra.mxu0 0.0
    %1607 = vmatprep.subr.mxu0 0.0
    %1608 = vmatpush1.msra.mxu0 0.0
    %1609 = vmatprep.subr.mxu0 0.0
    %1610 = vmatpush1.msra.mxu0 0.0
    %1611 = vmatprep.subr.mxu0 0.0
    %1612 = vmatpush1.msra.mxu0 0.0
    %1613 = vmatprep.subr.mxu0 0.0
    %1614 = vmatpush1.msra.mxu0 0.0
    %1615 = vmatprep.subr.mxu0 0.0
    %1616 = vmatpush1.msra.mxu0 0.0
    %1617 = vmatprep.subr.mxu0 0.0
    %1618 = vmatpush1.msra.mxu0 0.0
    %1619 = vmatprep.subr.mxu0 0.0
    %1620 = vmatpush1.msra.mxu0 0.0
    %1621 = vmatprep.mubr.f32.mxu0 0.0
    %1622 = vmatmul.mubr.f32.gmra.mrb[0].mxu0 %v1555
    %v1623 = vpop.f32.mrb[0].mxu0
    %v1624 = vadd.f32 %v70, %v1623
    %v1625 = vpop.f32.mrb[0].mxu0
    %1626 = vdwg.mxu0
    %v1627 = vxor.u32 %v1624, 2147483648
    %v1628 = vmul.f32 %v1627, 1.442695
    %v1629 = vpow.pop %v1628
    %v1630 = vadd.f32 %v1629, 1.0
    %v1631 = vrcp.pop %v1630
    %v1632 = vmul.f32 1.0, %v1631
    %v1633 = vtanh.pop %v1624
    %v1634 = vmul.f32 %v1632, %v1440
    %1636 = vrot.lane.b32.xlu0 %v1633, 64
    %v1637 = vpop.permute.xlu0 %1636
    %v1639 = vmul.f32 %v1632, %v1637
    %1641 = vrot.lane.b32.xlu0 %v1639, 32
    %v1642 = vpop.permute.xlu0 %1641
    %v1644 = vadd.f32 %v1634, %v1642
    %v1645 = vtanh.pop %v1644
    %1647 = vrot.lane.b32.xlu0 %v1645, 64
    %v1648 = vpop.permute.xlu0 %1647
    %v1650 = vmul.f32 %v1632, %v1648
    %v1651 = vsel %vm216, %v1547, 0
    %1653 = vmatprep.subr.mxu0 0.0
    %1654 = vmatpush1.msra.mxu0 %v212
    %1655 = vmatprep.subr.mxu0 0.0
    %1656 = vmatpush1.msra.mxu0 %v213
    %1657 = vmatprep.subr.mxu0 0.0
    %1658 = vmatpush1.msra.mxu0 %v214
    %1659 = vmatprep.subr.mxu0 0.0
    %1660 = vmatpush1.msra.mxu0 %v215
    %1661 = vmatprep.subr.mxu0 0.0
    %1662 = vmatpush1.msra.mxu0 0.0
    %1663 = vmatprep.subr.mxu0 0.0
    %1664 = vmatpush1.msra.mxu0 0.0
    %1665 = vmatprep.subr.mxu0 0.0
    %1666 = vmatpush1.msra.mxu0 0.0
    %1667 = vmatprep.subr.mxu0 0.0
    %1668 = vmatpush1.msra.mxu0 0.0
    %1669 = vmatprep.subr.mxu0 0.0
    %1670 = vmatpush1.msra.mxu0 0.0
    %1671 = vmatprep.subr.mxu0 0.0
    %1672 = vmatpush1.msra.mxu0 0.0
    %1673 = vmatprep.subr.mxu0 0.0
    %1674 = vmatpush1.msra.mxu0 0.0
    %1675 = vmatprep.subr.mxu0 0.0
    %1676 = vmatpush1.msra.mxu0 0.0
    %1677 = vmatprep.subr.mxu0 0.0
    %1678 = vmatpush1.msra.mxu0 0.0
    %1679 = vmatprep.subr.mxu0 0.0
    %1680 = vmatpush1.msra.mxu0 0.0
    %1681 = vmatprep.subr.mxu0 0.0
    %1682 = vmatpush1.msra.mxu0 0.0
    %1683 = vmatprep.subr.mxu0 0.0
    %1684 = vmatpush1.msra.mxu0 0.0
    %1685 = vmatprep.subr.mxu0 0.0
    %1686 = vmatpush1.msra.mxu0 0.0
    %1687 = vmatprep.subr.mxu0 0.0
    %1688 = vmatpush1.msra.mxu0 0.0
    %1689 = vmatprep.subr.mxu0 0.0
    %1690 = vmatpush1.msra.mxu0 0.0
    %1691 = vmatprep.subr.mxu0 0.0
    %1692 = vmatpush1.msra.mxu0 0.0
    %1693 = vmatprep.subr.mxu0 0.0
    %1694 = vmatpush1.msra.mxu0 0.0
    %1695 = vmatprep.subr.mxu0 0.0
    %1696 = vmatpush1.msra.mxu0 0.0
    %1697 = vmatprep.subr.mxu0 0.0
    %1698 = vmatpush1.msra.mxu0 0.0
    %1699 = vmatprep.subr.mxu0 0.0
    %1700 = vmatpush1.msra.mxu0 0.0
    %1701 = vmatprep.subr.mxu0 0.0
    %1702 = vmatpush1.msra.mxu0 0.0
    %1703 = vmatprep.subr.mxu0 0.0
    %1704 = vmatpush1.msra.mxu0 0.0
    %1705 = vmatprep.subr.mxu0 0.0
    %1706 = vmatpush1.msra.mxu0 0.0
    %1707 = vmatprep.subr.mxu0 0.0
    %1708 = vmatpush1.msra.mxu0 0.0
    %1709 = vmatprep.subr.mxu0 0.0
    %1710 = vmatpush1.msra.mxu0 0.0
    %1711 = vmatprep.subr.mxu0 0.0
    %1712 = vmatpush1.msra.mxu0 0.0
    %1713 = vmatprep.subr.mxu0 0.0
    %1714 = vmatpush1.msra.mxu0 0.0
    %1715 = vmatprep.subr.mxu0 0.0
    %1716 = vmatpush1.msra.mxu0 0.0
    %1717 = vmatprep.mubr.f32.mxu0 0.0
    %1718 = vmatmul.mubr.f32.gmra.mrb[0].mxu0 %v1651
    %v1719 = vpop.f32.mrb[0].mxu0
    %v1720 = vadd.f32 0.0, %v1719
    %v1721 = vpop.f32.mrb[0].mxu0
    %1722 = vdwg.mxu0
    %v1723 = vadd.f32 %v209, %v1720
    %v1724 = vadd.f32 %v1723, %v63
    %v1725 = vxor.u32 %v1724, 2147483648
    %v1726 = vmul.f32 %v1725, 1.442695
    %v1727 = vpow.pop %v1726
    %v1728 = vadd.f32 %v1727, 1.0
    %v1729 = vrcp.pop %v1728
    %v1730 = vmul.f32 1.0, %v1729
    %v1731 = vtanh.pop %v1724
    %v1732 = vmul.f32 %v1730, %v1538
    %1734 = vrot.lane.b32.xlu0 %v1731, 64
    %v1735 = vpop.permute.xlu0 %1734
    %v1737 = vmul.f32 %v1730, %v1735
    %1739 = vrot.lane.b32.xlu0 %v1737, 32
    %v1740 = vpop.permute.xlu0 %1739
    %v1742 = vadd.f32 %v1732, %v1740
    %v1743 = vtanh.pop %v1742
    %1745 = vrot.lane.b32.xlu0 %v1743, 64
    %v1746 = vpop.permute.xlu0 %1745
    %v1748 = vmul.f32 %v1730, %v1746
    %1750 = vrot.lane.b32.xlu0 %v1748, 32
    %v1751 = vpop.permute.xlu0 %1750
    %1754 = vrot.lane.b32.xlu0 %v1650, 64
    %v1755 = vpop.permute.xlu0 %1754
    %v1757 = vsel %vm216, %v1751, %v1755
    %v1759 = vsel %vm329, %v1757, 0
    %1761 = vmatprep.subr.mxu0 0.0
    %1762 = vmatpush1.msra.mxu0 %v321
    %1763 = vmatprep.subr.mxu0 0.0
    %1764 = vmatpush1.msra.mxu0 %v322
    %1765 = vmatprep.subr.mxu0 0.0
    %1766 = vmatpush1.msra.mxu0 %v323
    %1767 = vmatprep.subr.mxu0 0.0
    %1768 = vmatpush1.msra.mxu0 %v324
    %1769 = vmatprep.subr.mxu0 0.0
    %1770 = vmatpush1.msra.mxu0 %v325
    %1771 = vmatprep.subr.mxu0 0.0
    %1772 = vmatpush1.msra.mxu0 %v326
    %1773 = vmatprep.subr.mxu0 0.0
    %1774 = vmatpush1.msra.mxu0 %v327
    %1775 = vmatprep.subr.mxu0 0.0
    %1776 = vmatpush1.msra.mxu0 %v328
    %1777 = vmatprep.subr.mxu0 0.0
    %1778 = vmatpush1.msra.mxu0 0.0
    %1779 = vmatprep.subr.mxu0 0.0
    %1780 = vmatpush1.msra.mxu0 0.0
    %1781 = vmatprep.subr.mxu0 0.0
    %1782 = vmatpush1.msra.mxu0 0.0
    %1783 = vmatprep.subr.mxu0 0.0
    %1784 = vmatpush1.msra.mxu0 0.0
    %1785 = vmatprep.subr.mxu0 0.0
    %1786 = vmatpush1.msra.mxu0 0.0
    %1787 = vmatprep.subr.mxu0 0.0
    %1788 = vmatpush1.msra.mxu0 0.0
    %1789 = vmatprep.subr.mxu0 0.0
    %1790 = vmatpush1.msra.mxu0 0.0
    %1791 = vmatprep.subr.mxu0 0.0
    %1792 = vmatpush1.msra.mxu0 0.0
    %1793 = vmatprep.subr.mxu0 0.0
    %1794 = vmatpush1.msra.mxu0 0.0
    %1795 = vmatprep.subr.mxu0 0.0
    %1796 = vmatpush1.msra.mxu0 0.0
    %1797 = vmatprep.subr.mxu0 0.0
    %1798 = vmatpush1.msra.mxu0 0.0
    %1799 = vmatprep.subr.mxu0 0.0
    %1800 = vmatpush1.msra.mxu0 0.0
    %1801 = vmatprep.subr.mxu0 0.0
    %1802 = vmatpush1.msra.mxu0 0.0
    %1803 = vmatprep.subr.mxu0 0.0
    %1804 = vmatpush1.msra.mxu0 0.0
    %1805 = vmatprep.subr.mxu0 0.0
    %1806 = vmatpush1.msra.mxu0 0.0
    %1807 = vmatprep.subr.mxu0 0.0
    %1808 = vmatpush1.msra.mxu0 0.0
    %1809 = vmatprep.subr.mxu0 0.0
    %1810 = vmatpush1.msra.mxu0 0.0
    %1811 = vmatprep.subr.mxu0 0.0
    %1812 = vmatpush1.msra.mxu0 0.0
    %1813 = vmatprep.subr.mxu0 0.0
    %1814 = vmatpush1.msra.mxu0 0.0
    %1815 = vmatprep.subr.mxu0 0.0
    %1816 = vmatpush1.msra.mxu0 0.0
    %1817 = vmatprep.subr.mxu0 0.0
    %1818 = vmatpush1.msra.mxu0 0.0
    %1819 = vmatprep.subr.mxu0 0.0
    %1820 = vmatpush1.msra.mxu0 0.0
    %1821 = vmatprep.subr.mxu0 0.0
    %1822 = vmatpush1.msra.mxu0 0.0
    %1823 = vmatprep.subr.mxu0 0.0
    %1824 = vmatpush1.msra.mxu0 0.0
    %1825 = vmatprep.mubr.f32.mxu0 0.0
    %1826 = vmatmul.mubr.f32.gmra.mrb[0].mxu0 %v1759
    %v1827 = vpop.f32.mrb[0].mxu0
    %v1828 = vadd.f32 %v70, %v1827
    %v1829 = vpop.f32.mrb[0].mxu0
    %1830 = vdwg.mxu0
    %v1831 = vxor.u32 %v1828, 2147483648
    %v1832 = vmul.f32 %v1831, 1.442695
    %v1833 = vpow.pop %v1832
    %v1834 = vadd.f32 %v1833, 1.0
    %v1835 = vrcp.pop %v1834
    %v1836 = vmul.f32 1.0, %v1835
    %v1837 = vtanh.pop %v1828
    %v1838 = vmul.f32 %v1836, %v1644
    %1840 = vrot.lane.b32.xlu0 %v1837, 64
    %v1841 = vpop.permute.xlu0 %1840
    %v1843 = vmul.f32 %v1836, %v1841
    %1845 = vrot.lane.b32.xlu0 %v1843, 32
    %v1846 = vpop.permute.xlu0 %1845
    %v1848 = vadd.f32 %v1838, %v1846
    %v1849 = vtanh.pop %v1848
    %1851 = vrot.lane.b32.xlu0 %v1849, 64
    %v1852 = vpop.permute.xlu0 %1851
    %v1854 = vmul.f32 %v1836, %v1852
    %1855 = vrot.lane.b32.xlu0 %v426, 32
    %v1856 = vpop.permute.xlu0 %1855
    %1858 = vrot.lane.b32.xlu0 %v834, 96
    %v1859 = vpop.permute.xlu0 %1858
    %1861 = vrot.lane.b32.xlu0 %v1242, 32
    %v1862 = vpop.permute.xlu0 %1861
    %1864 = vrot.lane.b32.xlu0 %v1650, 96
    %v1865 = vpop.permute.xlu0 %1864
    %v1867 = vsel %vm216, %v1856, %v735
    %v1868 = vsel %vm329, %v1867, %v1859
    %vm1869 = vcmask 785408
    %v1870 = vsel %vm1869, %v1868, %v1038
    %v1871 = vsel %vm216, %v1862, %v1551
    %v1872 = vsel %vm329, %v1871, %v1865
    %v1873 = vsel %vm1869, %v1872, %v1854
    %v1874 = vld [vmem:[#allocation5] sm:$0xff]
    %v1875 = vld [vmem:[#allocation5 + $0x8] sm:$0xff]
    %v1876 = vld [vmem:[#allocation5 + $0x10] sm:$0xff]
    %v1877 = vld [vmem:[#allocation5 + $0x18] sm:$0xff]
    %v1878 = vld [vmem:[#allocation5 + $0x20] sm:$0xff]
    %v1879 = vld [vmem:[#allocation5 + $0x28] sm:$0xff]
    %v1880 = vld [vmem:[#allocation5 + $0x30] sm:$0xff]
    %v1881 = vld [vmem:[#allocation5 + $0x38] sm:$0xff]
    %v1882 = vld [vmem:[#allocation5 + $0x40] sm:$0xff]
    %v1883 = vld [vmem:[#allocation5 + $0x48] sm:$0xff]
    %v1884 = vld [vmem:[#allocation5 + $0x50] sm:$0xff]
    %v1885 = vld [vmem:[#allocation5 + $0x58] sm:$0xff]
    %v1886 = vld [vmem:[#allocation5 + $0x60] sm:$0xff]
    %v1887 = vld [vmem:[#allocation5 + $0x68] sm:$0xff]
    %v1888 = vld [vmem:[#allocation5 + $0x70] sm:$0xff]
    %v1889 = vld [vmem:[#allocation5 + $0x78] sm:$0xff]
    %v1890 = vld [vmem:[#allocation5 + $0x80] sm:$0xff]
    %v1891 = vld [vmem:[#allocation5 + $0x88] sm:$0xff]
    %v1892 = vld [vmem:[#allocation5 + $0x90] sm:$0xff]
    %v1893 = vld [vmem:[#allocation5 + $0x98] sm:$0xff]
    %v1894 = vld [vmem:[#allocation5 + $0xa0] sm:$0xff]
    %v1895 = vld [vmem:[#allocation5 + $0xa8] sm:$0xff]
    %v1896 = vld [vmem:[#allocation5 + $0xb0] sm:$0xff]
    %v1897 = vld [vmem:[#allocation5 + $0xb8] sm:$0xff]
    %v1898 = vld [vmem:[#allocation5 + $0xc0] sm:$0xff]
    %v1899 = vld [vmem:[#allocation5 + $0xc8] sm:$0xff]
    %v1900 = vld [vmem:[#allocation5 + $0xd0] sm:$0xff]
    %v1901 = vld [vmem:[#allocation5 + $0xd8] sm:$0xff]
    %v1902 = vld [vmem:[#allocation5 + $0xe0] sm:$0xff]
    %v1903 = vld [vmem:[#allocation5 + $0xe8] sm:$0xff]
    %v1904 = vld [vmem:[#allocation5 + $0xf0] sm:$0xff]
    %v1905 = vld [vmem:[#allocation5 + $0xf8] sm:$0xff]
    %v1906 = vld [vmem:[%s7] sm:$0x1]
    %v1908 = vlaneseq
    %v1909 = vshrl.u32 %v1908, 7
    %v1910 = vsub.s32 0, %v1909
    %v1911 = vrot.slane %v1906, %v1910
    %1913 = vmatprep.subr.mxu0 0.0
    %1914 = vmatpush1.msra.mxu0 %v1874
    %1915 = vmatprep.subr.mxu0 0.0
    %1916 = vmatpush1.msra.mxu0 %v1875
    %1917 = vmatprep.subr.mxu0 0.0
    %1918 = vmatpush1.msra.mxu0 %v1876
    %1919 = vmatprep.subr.mxu0 0.0
    %1920 = vmatpush1.msra.mxu0 %v1877
    %1921 = vmatprep.subr.mxu0 0.0
    %1922 = vmatpush1.msra.mxu0 %v1878
    %1923 = vmatprep.subr.mxu0 0.0
    %1924 = vmatpush1.msra.mxu0 %v1879
    %1925 = vmatprep.subr.mxu0 0.0
    %1926 = vmatpush1.msra.mxu0 %v1880
    %1927 = vmatprep.subr.mxu0 0.0
    %1928 = vmatpush1.msra.mxu0 %v1881
    %1929 = vmatprep.subr.mxu0 0.0
    %1930 = vmatpush1.msra.mxu0 %v1882
    %1931 = vmatprep.subr.mxu0 0.0
    %1932 = vmatpush1.msra.mxu0 %v1883
    %1933 = vmatprep.subr.mxu0 0.0
    %1934 = vmatpush1.msra.mxu0 %v1884
    %1935 = vmatprep.subr.mxu0 0.0
    %1936 = vmatpush1.msra.mxu0 %v1885
    %1937 = vmatprep.subr.mxu0 0.0
    %1938 = vmatpush1.msra.mxu0 %v1886
    %1939 = vmatprep.subr.mxu0 0.0
    %1940 = vmatpush1.msra.mxu0 %v1887
    %1941 = vmatprep.subr.mxu0 0.0
    %1942 = vmatpush1.msra.mxu0 %v1888
    %1943 = vmatprep.subr.mxu0 0.0
    %1944 = vmatpush1.msra.mxu0 %v1889
    %1945 = vmatprep.subr.mxu0 0.0
    %1946 = vmatpush1.msra.mxu0 %v1890
    %1947 = vmatprep.subr.mxu0 0.0
    %1948 = vmatpush1.msra.mxu0 %v1891
    %1949 = vmatprep.subr.mxu0 0.0
    %1950 = vmatpush1.msra.mxu0 %v1892
    %1951 = vmatprep.subr.mxu0 0.0
    %1952 = vmatpush1.msra.mxu0 %v1893
    %1953 = vmatprep.subr.mxu0 0.0
    %1954 = vmatpush1.msra.mxu0 %v1894
    %1955 = vmatprep.subr.mxu0 0.0
    %1956 = vmatpush1.msra.mxu0 %v1895
    %1957 = vmatprep.subr.mxu0 0.0
    %1958 = vmatpush1.msra.mxu0 %v1896
    %1959 = vmatprep.subr.mxu0 0.0
    %1960 = vmatpush1.msra.mxu0 %v1897
    %1961 = vmatprep.subr.mxu0 0.0
    %1962 = vmatpush1.msra.mxu0 %v1898
    %1963 = vmatprep.subr.mxu0 0.0
    %1964 = vmatpush1.msra.mxu0 %v1899
    %1965 = vmatprep.subr.mxu0 0.0
    %1966 = vmatpush1.msra.mxu0 %v1900
    %1967 = vmatprep.subr.mxu0 0.0
    %1968 = vmatpush1.msra.mxu0 %v1901
    %1969 = vmatprep.subr.mxu0 0.0
    %1970 = vmatpush1.msra.mxu0 %v1902
    %1971 = vmatprep.subr.mxu0 0.0
    %1972 = vmatpush1.msra.mxu0 %v1903
    %1973 = vmatprep.subr.mxu0 0.0
    %1974 = vmatpush1.msra.mxu0 %v1904
    %1975 = vmatprep.subr.mxu0 0.0
    %1976 = vmatpush1.msra.mxu0 %v1905
    %1977 = vmatprep.mubr.f32.mxu0 %v1873
    %1978 = vmatmul.mubr.f32.gmra.mrb[0].mxu0 %v1870
    %v1979 = vpop.f32.mrb[0].mxu0
    %v1980 = vadd.f32 %v1911, %v1979
    %v1981 = vpop.f32.mrb[0].mxu0
    %1982 = vdwg.mxu0
    %1983 = vst [vmem:[#allocation7] sm:$0xff] %v1980
    // Predicated region
    $region42: #{tpu_custom_call.1} parent=1 // pred_check
      _
    $region43: #{tpu_custom_call.1} parent=1 // pred_check_branch
      %1985 = sbr.rel (0) target = $region45
    $region44: #{tpu_custom_call.1} parent=1 // pred_region
      %s1987 = ssub.s32 128, 128
      %1988 = vsyncadd [#allocation4], %s1987
      %s1990 = sshll.u32 [#allocation7], 4
      %s1991 = int_to_ptr.vmem [resolvable:$true] %s1990
      %1993 = dma.vmem_to_hbm [thread:$0]  %s1991, 128, %s8, [#allocation4]
    $region45: #{tpu_custom_call.1} parent=1 // pred_fallthru
      _
    // Predicated region
    $region46: #{tpu_custom_call.1} parent=1 // pred_check
      _
    $region47: #{tpu_custom_call.1} parent=1 // pred_check_branch
      %1995 = sbr.rel (0) target = $region49
    $region48: #{tpu_custom_call.1} parent=1 // pred_region
      %1996 = dma.done [#allocation4], 128
    $region49: #{tpu_custom_call.1} parent=1 // pred_fallthru
      _
    %1997 = vsyncpa [#allocation3], 1
    %1998 = vsyncpa [#allocation6], 1
    %1999 = vsyncpa [#allocation4], 1

</llo_original>
